<compile_context>
chip_gen: v7x
topology: tpu7x:2x2x1
jax: 0.10.0
libtpu: 0.0.40
codegen_flags: <defaults>
</compile_context>

<pallas_src>
import functools

import jax
import jax.numpy as jnp
from jax.experimental import pallas as pl
from jax.experimental.pallas import tpu as pltpu


def _round_up(x, m):
    return (x + m - 1) // m * m


def _gating_kernel(data_ref, slab_ref, out_ref, *,
                   num_layers, hidden, seq_len, batch, in_dims,
                   linear_hidden, num_out, offsets):
    H = hidden
    B = batch
    S = seq_len
    G = 4 * H

    def piece(name, rows, cols):
        off = offsets[name]                      # static Python int
        return slab_ref[off:off + rows, :cols]

    # Gate-activation constants, hoisted and pre-broadcast to (B, 4H) so the unrolled
    # timestep loop contains no re-emitted broadcast_in_dim.
    # Packed gate order is (i, f, o | g):
    #   sigmoid(z) = 0.5 * tanh(0.5*z) + 0.5   on lanes [0:3H]
    #   tanh(z)                                on lanes [3H:4H]
    half3 = jnp.full((B, 3 * H), 0.5, jnp.float32)
    scale = jnp.concatenate([half3, jnp.ones((B, H), jnp.float32)], axis=1)   # (B, 4H)
    shift = jnp.concatenate([half3, jnp.zeros((B, H), jnp.float32)], axis=1)  # (B, 4H)

    x_flat = data_ref[...]                       # (S*B, D) time-major, f32

    hs = []
    for l in range(num_layers):
        in_l = in_dims[l]
        wihT = piece(f"wihT{l}", in_l, G)        # (in_l, 4H)
        whhT = piece(f"whhT{l}", H, G)           # (H,    4H)
        b = piece(f"b{l}", 1, G)                 # (1,    4H) == b_ih + b_hh

        # Batched input->hidden projection for all timesteps at once (M = S*B),
        # bias folded in here (once per layer, not per step).
        gates_x = jnp.dot(x_flat, wihT,
                          preferred_element_type=jnp.float32) + b   # (S*B, 4H)

        h = jnp.zeros((B, H), jnp.float32)
        c = jnp.zeros((B, H), jnp.float32)
        hs = []
        for t in range(S):
            pre = gates_x[t * B:(t + 1) * B, :] + jnp.dot(
                h, whhT, preferred_element_type=jnp.float32)        # (B, 4H)
            act = jnp.tanh(pre * scale) * scale + shift             # one EUP tanh pass
            i_g = act[:, 0 * H:1 * H]
            f_g = act[:, 1 * H:2 * H]
            o_g = act[:, 2 * H:3 * H]
            g_g = act[:, 3 * H:4 * H]
            c = f_g * c + i_g * g_g
            h = o_g * jnp.tanh(c)
            hs.append(h)
        if l + 1 < num_layers:
            x_flat = jnp.concatenate(hs, axis=0)  # (S*B, H) time-major, feeds next layer

    o1 = hs[-1]                                   # (B, H): last timestep, last layer
    w1T = piece("w1T", B, linear_hidden)          # (B, LH)
    b1 = piece("b1", 1, linear_hidden)            # (1, LH)
    w2T = piece("w2T", linear_hidden, num_out)    # (LH, 5)
    b2 = piece("b2", 1, num_out)                  # (1, 5)

    # o2 = torch.t(o1) @ w1.T + b1.  The tiny (B,H) transpose is one-shot (not on the
    # recurrence); kept explicit instead of a trans_a dot for lowering robustness.
    o2 = jnp.dot(o1.T, w1T, preferred_element_type=jnp.float32) + b1   # (H, LH)
    o3 = jnp.tanh(o2)
    o4 = jnp.dot(o3, w2T, preferred_element_type=jnp.float32) + b2     # (H, 5)

    m = jnp.max(o4, axis=1, keepdims=True)
    e = jnp.exp(o4 - m)
    out_ref[...] = e / jnp.sum(e, axis=1, keepdims=True)


def pack_gating_params(lstm_weights, w1, b1, w2, b2):
    """Pack all weights into one lane-dense f32 slab (single DMA) + static metadata.

    lstm_weights: list of (w_ih (4H,in), w_hh (4H,H), b_ih (4H,), b_hh (4H,)) per layer,
    PyTorch gate order (i, f, g, o).  Gates are reordered here to (i, f, o, g).
    """
    num_layers = len(lstm_weights)
    H = lstm_weights[0][1].shape[1]              # w_hh: (4H, H)
    G = 4 * H

    def reorder(a):                              # rows [i,f,g,o] -> [i,f,o,g]
        return jnp.concatenate([a[0:H], a[H:2 * H], a[3 * H:4 * H], a[2 * H:3 * H]],
                               axis=0)

    pieces = []
    in_dims = []
    for l, (wih, whh, b_ih, b_hh) in enumerate(lstm_weights):
        in_dims.append(wih.shape[1])
        pieces.append((f"wihT{l}", reorder(jnp.asarray(wih, jnp.float32)).T))   # (in,4H)
        pieces.append((f"whhT{l}", reorder(jnp.asarray(whh, jnp.float32)).T))   # (H, 4H)
        pieces.append((f"b{l}",
                       reorder(jnp.asarray(b_ih + b_hh, jnp.float32)).reshape(1, G)))
    pieces.append(("w1T", jnp.asarray(w1, jnp.float32).T))            # (B, LH)
    pieces.append(("b1", jnp.asarray(b1, jnp.float32).reshape(1, -1)))
    pieces.append(("w2T", jnp.asarray(w2, jnp.float32).T))            # (LH, 5)
    pieces.append(("b2", jnp.asarray(b2, jnp.float32).reshape(1, -1)))

    lane = _round_up(max(p.shape[1] for _, p in pieces), 128)
    offsets = {}
    off = 0
    for name, p in pieces:
        offsets[name] = off
        off += _round_up(p.shape[0], 8)          # keep sublane-aligned slices
    slab = jnp.zeros((off, lane), jnp.float32)
    for name, p in pieces:
        slab = slab.at[offsets[name]:offsets[name] + p.shape[0], :p.shape[1]].set(p)

    meta = dict(num_layers=num_layers, hidden=H, in_dims=tuple(in_dims),
                linear_hidden=int(w1.shape[0]), num_out=int(w2.shape[0]),
                offsets=offsets)
    return slab, meta


def gating_forward_packed(data, slab, meta):
    """data: (B, S, D) batch-first; slab/meta from pack_gating_params."""
    B, S, D = data.shape
    H = meta["hidden"]
    num_out = meta["num_out"]
    # Time-major flat layout: row t*B + b  ->  one (S*B, D) slab, no mid-axis slicing
    # inside the kernel.
    data_tm = jnp.transpose(data.astype(jnp.float32), (1, 0, 2)).reshape(S * B, D)

    kernel = functools.partial(
        _gating_kernel,
        num_layers=meta["num_layers"], hidden=H, seq_len=S, batch=B,
        in_dims=meta["in_dims"], linear_hidden=meta["linear_hidden"],
        num_out=num_out, offsets=meta["offsets"])

    return pl.pallas_call(
        kernel,
        out_shape=jax.ShapeDtypeStruct((H, num_out), jnp.float32),
        in_specs=[pl.BlockSpec(memory_space=pltpu.MemorySpace.VMEM),
                  pl.BlockSpec(memory_space=pltpu.MemorySpace.VMEM)],
        out_specs=pl.BlockSpec(memory_space=pltpu.MemorySpace.VMEM),
    )(data_tm, slab)


def gating_network_forward(data, lstm_weights, w1, b1, w2, b2):
    """Convenience one-shot API (packs params then calls the kernel)."""
    slab, meta = pack_gating_params(lstm_weights, w1, b1, w2, b2)
    return gating_forward_packed(data, slab, meta)


def reference_forward(data, lstm_weights, w1, b1, w2, b2):
    """Pure-JAX reference mirroring the PyTorch module semantics."""
    B, S, D = data.shape
    H = lstm_weights[0][1].shape[1]
    x = data
    for (wih, whh, b_ih, b_hh) in lstm_weights:
        h = jnp.zeros((B, H), jnp.float32)
        c = jnp.zeros((B, H), jnp.float32)
        outs = []
        for t in range(S):
            gates = x[:, t, :] @ wih.T + h @ whh.T + b_ih + b_hh
            i = jax.nn.sigmoid(gates[:, :H])
            f = jax.nn.sigmoid(gates[:, H:2 * H])
            g = jnp.tanh(gates[:, 2 * H:3 * H])
            o = jax.nn.sigmoid(gates[:, 3 * H:4 * H])
            c = f * c + i * g
            h = o * jnp.tanh(c)
            outs.append(h)
        x = jnp.stack(outs, axis=1)
    o1 = x[:, -1, :]
    o2 = o1.T @ w1.T + b1
    o3 = jnp.tanh(o2)
    o4 = o3 @ w2.T + b2
    return jax.nn.softmax(o4, axis=1)


if __name__ == "__main__":
    # params: batch_size=8 (== l1 input dim), recurrent_hidden_dim=32,
    #         layer_dim=2, linear_hidden_dim=32, input_dim=16, seq=8.
    B, S, D = 8, 8, 16
    H, L, LH = 32, 2, 32

    key = jax.random.PRNGKey(0)
    keys = jax.random.split(key, 4 * L + 5)
    data = jax.random.normal(keys[0], (B, S, D), jnp.float32)

    lstm_weights = []
    kidx = 1
    bound = 1.0 / (H ** 0.5)
    for l in range(L):
        in_dim = D if l == 0 else H
        wih = jax.random.uniform(keys[kidx], (4 * H, in_dim), jnp.float32, -bound, bound); kidx += 1
        whh = jax.random.uniform(keys[kidx], (4 * H, H), jnp.float32, -bound, bound); kidx += 1
        b_ih = jax.random.uniform(keys[kidx], (4 * H,), jnp.float32, -bound, bound); kidx += 1
        b_hh = jax.random.uniform(keys[kidx], (4 * H,), jnp.float32, -bound, bound); kidx += 1
        lstm_weights.append((wih, whh, b_ih, b_hh))

    kb1 = 1.0 / (B ** 0.5)
    w1 = jax.random.uniform(keys[kidx], (LH, B), jnp.float32, -kb1, kb1); kidx += 1
    b1 = jax.random.uniform(keys[kidx], (LH,), jnp.float32, -kb1, kb1); kidx += 1
    kb2 = 1.0 / (LH ** 0.5)
    w2 = jax.random.uniform(keys[kidx], (5, LH), jnp.float32, -kb2, kb2); kidx += 1
    b2 = jax.random.uniform(keys[kidx], (5,), jnp.float32, -kb2, kb2); kidx += 1

    # Pack weights once (off the per-call path), then call the kernel via a jitted
    # closure so the data-layout glue fuses around the pallas_call.
    slab, meta = pack_gating_params(lstm_weights, w1, b1, w2, b2)
    slab = jax.block_until_ready(slab)
    fwd = jax.jit(lambda d, s: gating_forward_packed(d, s, meta))

    out = jax.block_until_ready(fwd(data, slab))

    ref = reference_forward(data, lstm_weights, w1, b1, w2, b2)
    assert out.shape == (H, 5), out.shape
    max_err = float(jnp.max(jnp.abs(out - ref)))
    assert jnp.allclose(out, ref, atol=2e-3, rtol=2e-3), f"max_err={max_err}"
    print("KERNEL_OK")
</pallas_src>

<mosaic_0001>
module attributes {stable_mosaic.version = 11 : i64} {
  func.func @_gating_kernel(%arg0: memref<64x16xf32, #tpu.memory_space<vmem>>, %arg1: memref<184x128xf32, #tpu.memory_space<vmem>>, %arg2: memref<32x5xf32, #tpu.memory_space<vmem>>) attributes {dimension_semantics = [], scalar_prefetch = 0 : i64, scratch_operands = 0 : i64, tpu.core_type = #tpu.core_type<tc>} {
    %cst = arith.constant 5.000000e-01 : f32
    %0 = vector.broadcast %cst : f32 to vector<8x96xf32>
    %cst_0 = arith.constant 1.000000e+00 : f32
    %1 = vector.broadcast %cst_0 : f32 to vector<8x32xf32>
    %2 = tpu.concatenate %0, %1 in 1 : vector<8x96xf32>, vector<8x32xf32> -> vector<8x128xf32>
    %cst_1 = arith.constant 0.000000e+00 : f32
    %3 = vector.broadcast %cst_1 : f32 to vector<8x32xf32>
    %4 = tpu.concatenate %0, %3 in 1 : vector<8x96xf32>, vector<8x32xf32> -> vector<8x128xf32>
    %c0 = arith.constant 0 : index
    %c0_2 = arith.constant 0 : index
    %5 = vector.load %arg0[%c0, %c0_2] : memref<64x16xf32, #tpu.memory_space<vmem>>, vector<64x16xf32>
    %c0_3 = arith.constant 0 : index
    %c0_4 = arith.constant 0 : index
    %6 = vector.load %arg1[%c0_3, %c0_4] : memref<184x128xf32, #tpu.memory_space<vmem>>, vector<16x128xf32>
    %c16 = arith.constant 16 : index
    %c0_5 = arith.constant 0 : index
    %7 = vector.load %arg1[%c16, %c0_5] : memref<184x128xf32, #tpu.memory_space<vmem>>, vector<32x128xf32>
    %c48 = arith.constant 48 : index
    %c0_6 = arith.constant 0 : index
    %8 = vector.load %arg1[%c48, %c0_6] : memref<184x128xf32, #tpu.memory_space<vmem>>, vector<1x128xf32>
    %cst_7 = arith.constant dense<0.000000e+00> : vector<64x128xf32>
    %9 = tpu.matmul %5, %6, %cst_7 {dimension_numbers = #tpu.dot_dimension_numbers<[1], [0], [0], [1], [0, 0, 1, 1], [], []>} : vector<64x16xf32>, vector<16x128xf32>, vector<64x128xf32> -> vector<64x128xf32>
    %10 = vector.broadcast %8 : vector<1x128xf32> to vector<64x128xf32>
    %11 = arith.addf %9, %10 : vector<64x128xf32>
    %cst_8 = arith.constant 0.000000e+00 : f32
    %12 = vector.broadcast %cst_8 : f32 to vector<8x32xf32>
    %cst_9 = arith.constant 0.000000e+00 : f32
    %13 = vector.broadcast %cst_9 : f32 to vector<8x32xf32>
    %14 = vector.extract_strided_slice %11 {offsets = [0, 0], sizes = [8, 128], strides = [1, 1]} : vector<64x128xf32> to vector<8x128xf32>
    %cst_10 = arith.constant dense<0.000000e+00> : vector<8x128xf32>
    %15 = tpu.matmul %12, %7, %cst_10 {dimension_numbers = #tpu.dot_dimension_numbers<[1], [0], [0], [1], [0, 0, 1, 1], [], []>} : vector<8x32xf32>, vector<32x128xf32>, vector<8x128xf32> -> vector<8x128xf32>
    %16 = arith.addf %14, %15 : vector<8x128xf32>
    %17 = arith.mulf %16, %2 : vector<8x128xf32>
    %18 = math.tanh %17 : vector<8x128xf32>
    %19 = arith.mulf %18, %2 : vector<8x128xf32>
    %20 = arith.addf %19, %4 : vector<8x128xf32>
    %21 = vector.extract_strided_slice %20 {offsets = [0, 0], sizes = [8, 32], strides = [1, 1]} : vector<8x128xf32> to vector<8x32xf32>
    %22 = vector.extract_strided_slice %20 {offsets = [0, 32], sizes = [8, 32], strides = [1, 1]} : vector<8x128xf32> to vector<8x32xf32>
    %23 = vector.extract_strided_slice %20 {offsets = [0, 64], sizes = [8, 32], strides = [1, 1]} : vector<8x128xf32> to vector<8x32xf32>
    %24 = vector.extract_strided_slice %20 {offsets = [0, 96], sizes = [8, 32], strides = [1, 1]} : vector<8x128xf32> to vector<8x32xf32>
    %25 = arith.mulf %22, %13 : vector<8x32xf32>
    %26 = arith.mulf %21, %24 : vector<8x32xf32>
    %27 = arith.addf %25, %26 : vector<8x32xf32>
    %28 = math.tanh %27 : vector<8x32xf32>
    %29 = arith.mulf %23, %28 : vector<8x32xf32>
    %30 = vector.extract_strided_slice %11 {offsets = [8, 0], sizes = [8, 128], strides = [1, 1]} : vector<64x128xf32> to vector<8x128xf32>
    %cst_11 = arith.constant dense<0.000000e+00> : vector<8x128xf32>
    %31 = tpu.matmul %29, %7, %cst_11 {dimension_numbers = #tpu.dot_dimension_numbers<[1], [0], [0], [1], [0, 0, 1, 1], [], []>} : vector<8x32xf32>, vector<32x128xf32>, vector<8x128xf32> -> vector<8x128xf32>
    %32 = arith.addf %30, %31 : vector<8x128xf32>
    %33 = arith.mulf %32, %2 : vector<8x128xf32>
    %34 = math.tanh %33 : vector<8x128xf32>
    %35 = arith.mulf %34, %2 : vector<8x128xf32>
    %36 = arith.addf %35, %4 : vector<8x128xf32>
    %37 = vector.extract_strided_slice %36 {offsets = [0, 0], sizes = [8, 32], strides = [1, 1]} : vector<8x128xf32> to vector<8x32xf32>
    %38 = vector.extract_strided_slice %36 {offsets = [0, 32], sizes = [8, 32], strides = [1, 1]} : vector<8x128xf32> to vector<8x32xf32>
    %39 = vector.extract_strided_slice %36 {offsets = [0, 64], sizes = [8, 32], strides = [1, 1]} : vector<8x128xf32> to vector<8x32xf32>
    %40 = vector.extract_strided_slice %36 {offsets = [0, 96], sizes = [8, 32], strides = [1, 1]} : vector<8x128xf32> to vector<8x32xf32>
    %41 = arith.mulf %38, %27 : vector<8x32xf32>
    %42 = arith.mulf %37, %40 : vector<8x32xf32>
    %43 = arith.addf %41, %42 : vector<8x32xf32>
    %44 = math.tanh %43 : vector<8x32xf32>
    %45 = arith.mulf %39, %44 : vector<8x32xf32>
    %46 = vector.extract_strided_slice %11 {offsets = [16, 0], sizes = [8, 128], strides = [1, 1]} : vector<64x128xf32> to vector<8x128xf32>
    %cst_12 = arith.constant dense<0.000000e+00> : vector<8x128xf32>
    %47 = tpu.matmul %45, %7, %cst_12 {dimension_numbers = #tpu.dot_dimension_numbers<[1], [0], [0], [1], [0, 0, 1, 1], [], []>} : vector<8x32xf32>, vector<32x128xf32>, vector<8x128xf32> -> vector<8x128xf32>
    %48 = arith.addf %46, %47 : vector<8x128xf32>
    %49 = arith.mulf %48, %2 : vector<8x128xf32>
    %50 = math.tanh %49 : vector<8x128xf32>
    %51 = arith.mulf %50, %2 : vector<8x128xf32>
    %52 = arith.addf %51, %4 : vector<8x128xf32>
    %53 = vector.extract_strided_slice %52 {offsets = [0, 0], sizes = [8, 32], strides = [1, 1]} : vector<8x128xf32> to vector<8x32xf32>
    %54 = vector.extract_strided_slice %52 {offsets = [0, 32], sizes = [8, 32], strides = [1, 1]} : vector<8x128xf32> to vector<8x32xf32>
    %55 = vector.extract_strided_slice %52 {offsets = [0, 64], sizes = [8, 32], strides = [1, 1]} : vector<8x128xf32> to vector<8x32xf32>
    %56 = vector.extract_strided_slice %52 {offsets = [0, 96], sizes = [8, 32], strides = [1, 1]} : vector<8x128xf32> to vector<8x32xf32>
    %57 = arith.mulf %54, %43 : vector<8x32xf32>
    %58 = arith.mulf %53, %56 : vector<8x32xf32>
    %59 = arith.addf %57, %58 : vector<8x32xf32>
    %60 = math.tanh %59 : vector<8x32xf32>
    %61 = arith.mulf %55, %60 : vector<8x32xf32>
    %62 = vector.extract_strided_slice %11 {offsets = [24, 0], sizes = [8, 128], strides = [1, 1]} : vector<64x128xf32> to vector<8x128xf32>
    %cst_13 = arith.constant dense<0.000000e+00> : vector<8x128xf32>
    %63 = tpu.matmul %61, %7, %cst_13 {dimension_numbers = #tpu.dot_dimension_numbers<[1], [0], [0], [1], [0, 0, 1, 1], [], []>} : vector<8x32xf32>, vector<32x128xf32>, vector<8x128xf32> -> vector<8x128xf32>
    %64 = arith.addf %62, %63 : vector<8x128xf32>
    %65 = arith.mulf %64, %2 : vector<8x128xf32>
    %66 = math.tanh %65 : vector<8x128xf32>
    %67 = arith.mulf %66, %2 : vector<8x128xf32>
    %68 = arith.addf %67, %4 : vector<8x128xf32>
    %69 = vector.extract_strided_slice %68 {offsets = [0, 0], sizes = [8, 32], strides = [1, 1]} : vector<8x128xf32> to vector<8x32xf32>
    %70 = vector.extract_strided_slice %68 {offsets = [0, 32], sizes = [8, 32], strides = [1, 1]} : vector<8x128xf32> to vector<8x32xf32>
    %71 = vector.extract_strided_slice %68 {offsets = [0, 64], sizes = [8, 32], strides = [1, 1]} : vector<8x128xf32> to vector<8x32xf32>
    %72 = vector.extract_strided_slice %68 {offsets = [0, 96], sizes = [8, 32], strides = [1, 1]} : vector<8x128xf32> to vector<8x32xf32>
    %73 = arith.mulf %70, %59 : vector<8x32xf32>
    %74 = arith.mulf %69, %72 : vector<8x32xf32>
    %75 = arith.addf %73, %74 : vector<8x32xf32>
    %76 = math.tanh %75 : vector<8x32xf32>
    %77 = arith.mulf %71, %76 : vector<8x32xf32>
    %78 = vector.extract_strided_slice %11 {offsets = [32, 0], sizes = [8, 128], strides = [1, 1]} : vector<64x128xf32> to vector<8x128xf32>
    %cst_14 = arith.constant dense<0.000000e+00> : vector<8x128xf32>
    %79 = tpu.matmul %77, %7, %cst_14 {dimension_numbers = #tpu.dot_dimension_numbers<[1], [0], [0], [1], [0, 0, 1, 1], [], []>} : vector<8x32xf32>, vector<32x128xf32>, vector<8x128xf32> -> vector<8x128xf32>
    %80 = arith.addf %78, %79 : vector<8x128xf32>
    %81 = arith.mulf %80, %2 : vector<8x128xf32>
    %82 = math.tanh %81 : vector<8x128xf32>
    %83 = arith.mulf %82, %2 : vector<8x128xf32>
    %84 = arith.addf %83, %4 : vector<8x128xf32>
    %85 = vector.extract_strided_slice %84 {offsets = [0, 0], sizes = [8, 32], strides = [1, 1]} : vector<8x128xf32> to vector<8x32xf32>
    %86 = vector.extract_strided_slice %84 {offsets = [0, 32], sizes = [8, 32], strides = [1, 1]} : vector<8x128xf32> to vector<8x32xf32>
    %87 = vector.extract_strided_slice %84 {offsets = [0, 64], sizes = [8, 32], strides = [1, 1]} : vector<8x128xf32> to vector<8x32xf32>
    %88 = vector.extract_strided_slice %84 {offsets = [0, 96], sizes = [8, 32], strides = [1, 1]} : vector<8x128xf32> to vector<8x32xf32>
    %89 = arith.mulf %86, %75 : vector<8x32xf32>
    %90 = arith.mulf %85, %88 : vector<8x32xf32>
    %91 = arith.addf %89, %90 : vector<8x32xf32>
    %92 = math.tanh %91 : vector<8x32xf32>
    %93 = arith.mulf %87, %92 : vector<8x32xf32>
    %94 = vector.extract_strided_slice %11 {offsets = [40, 0], sizes = [8, 128], strides = [1, 1]} : vector<64x128xf32> to vector<8x128xf32>
    %cst_15 = arith.constant dense<0.000000e+00> : vector<8x128xf32>
    %95 = tpu.matmul %93, %7, %cst_15 {dimension_numbers = #tpu.dot_dimension_numbers<[1], [0], [0], [1], [0, 0, 1, 1], [], []>} : vector<8x32xf32>, vector<32x128xf32>, vector<8x128xf32> -> vector<8x128xf32>
    %96 = arith.addf %94, %95 : vector<8x128xf32>
    %97 = arith.mulf %96, %2 : vector<8x128xf32>
    %98 = math.tanh %97 : vector<8x128xf32>
    %99 = arith.mulf %98, %2 : vector<8x128xf32>
    %100 = arith.addf %99, %4 : vector<8x128xf32>
    %101 = vector.extract_strided_slice %100 {offsets = [0, 0], sizes = [8, 32], strides = [1, 1]} : vector<8x128xf32> to vector<8x32xf32>
    %102 = vector.extract_strided_slice %100 {offsets = [0, 32], sizes = [8, 32], strides = [1, 1]} : vector<8x128xf32> to vector<8x32xf32>
    %103 = vector.extract_strided_slice %100 {offsets = [0, 64], sizes = [8, 32], strides = [1, 1]} : vector<8x128xf32> to vector<8x32xf32>
    %104 = vector.extract_strided_slice %100 {offsets = [0, 96], sizes = [8, 32], strides = [1, 1]} : vector<8x128xf32> to vector<8x32xf32>
    %105 = arith.mulf %102, %91 : vector<8x32xf32>
    %106 = arith.mulf %101, %104 : vector<8x32xf32>
    %107 = arith.addf %105, %106 : vector<8x32xf32>
    %108 = math.tanh %107 : vector<8x32xf32>
    %109 = arith.mulf %103, %108 : vector<8x32xf32>
    %110 = vector.extract_strided_slice %11 {offsets = [48, 0], sizes = [8, 128], strides = [1, 1]} : vector<64x128xf32> to vector<8x128xf32>
    %cst_16 = arith.constant dense<0.000000e+00> : vector<8x128xf32>
    %111 = tpu.matmul %109, %7, %cst_16 {dimension_numbers = #tpu.dot_dimension_numbers<[1], [0], [0], [1], [0, 0, 1, 1], [], []>} : vector<8x32xf32>, vector<32x128xf32>, vector<8x128xf32> -> vector<8x128xf32>
    %112 = arith.addf %110, %111 : vector<8x128xf32>
    %113 = arith.mulf %112, %2 : vector<8x128xf32>
    %114 = math.tanh %113 : vector<8x128xf32>
    %115 = arith.mulf %114, %2 : vector<8x128xf32>
    %116 = arith.addf %115, %4 : vector<8x128xf32>
    %117 = vector.extract_strided_slice %116 {offsets = [0, 0], sizes = [8, 32], strides = [1, 1]} : vector<8x128xf32> to vector<8x32xf32>
    %118 = vector.extract_strided_slice %116 {offsets = [0, 32], sizes = [8, 32], strides = [1, 1]} : vector<8x128xf32> to vector<8x32xf32>
    %119 = vector.extract_strided_slice %116 {offsets = [0, 64], sizes = [8, 32], strides = [1, 1]} : vector<8x128xf32> to vector<8x32xf32>
    %120 = vector.extract_strided_slice %116 {offsets = [0, 96], sizes = [8, 32], strides = [1, 1]} : vector<8x128xf32> to vector<8x32xf32>
    %121 = arith.mulf %118, %107 : vector<8x32xf32>
    %122 = arith.mulf %117, %120 : vector<8x32xf32>
    %123 = arith.addf %121, %122 : vector<8x32xf32>
    %124 = math.tanh %123 : vector<8x32xf32>
    %125 = arith.mulf %119, %124 : vector<8x32xf32>
    %126 = vector.extract_strided_slice %11 {offsets = [56, 0], sizes = [8, 128], strides = [1, 1]} : vector<64x128xf32> to vector<8x128xf32>
    %cst_17 = arith.constant dense<0.000000e+00> : vector<8x128xf32>
    %127 = tpu.matmul %125, %7, %cst_17 {dimension_numbers = #tpu.dot_dimension_numbers<[1], [0], [0], [1], [0, 0, 1, 1], [], []>} : vector<8x32xf32>, vector<32x128xf32>, vector<8x128xf32> -> vector<8x128xf32>
    %128 = arith.addf %126, %127 : vector<8x128xf32>
    %129 = arith.mulf %128, %2 : vector<8x128xf32>
    %130 = math.tanh %129 : vector<8x128xf32>
    %131 = arith.mulf %130, %2 : vector<8x128xf32>
    %132 = arith.addf %131, %4 : vector<8x128xf32>
    %133 = vector.extract_strided_slice %132 {offsets = [0, 0], sizes = [8, 32], strides = [1, 1]} : vector<8x128xf32> to vector<8x32xf32>
    %134 = vector.extract_strided_slice %132 {offsets = [0, 32], sizes = [8, 32], strides = [1, 1]} : vector<8x128xf32> to vector<8x32xf32>
    %135 = vector.extract_strided_slice %132 {offsets = [0, 64], sizes = [8, 32], strides = [1, 1]} : vector<8x128xf32> to vector<8x32xf32>
    %136 = vector.extract_strided_slice %132 {offsets = [0, 96], sizes = [8, 32], strides = [1, 1]} : vector<8x128xf32> to vector<8x32xf32>
    %137 = arith.mulf %134, %123 : vector<8x32xf32>
    %138 = arith.mulf %133, %136 : vector<8x32xf32>
    %139 = arith.addf %137, %138 : vector<8x32xf32>
    %140 = math.tanh %139 : vector<8x32xf32>
    %141 = arith.mulf %135, %140 : vector<8x32xf32>
    %142 = tpu.concatenate %29, %45, %61, %77, %93, %109, %125, %141 in 0 : vector<8x32xf32>, vector<8x32xf32>, vector<8x32xf32>, vector<8x32xf32>, vector<8x32xf32>, vector<8x32xf32>, vector<8x32xf32>, vector<8x32xf32> -> vector<64x32xf32>
    %c56 = arith.constant 56 : index
    %c0_18 = arith.constant 0 : index
    %143 = vector.load %arg1[%c56, %c0_18] : memref<184x128xf32, #tpu.memory_space<vmem>>, vector<32x128xf32>
    %c88 = arith.constant 88 : index
    %c0_19 = arith.constant 0 : index
    %144 = vector.load %arg1[%c88, %c0_19] : memref<184x128xf32, #tpu.memory_space<vmem>>, vector<32x128xf32>
    %c136 = arith.constant 136 : index
    %c0_20 = arith.constant 0 : index
    %145 = vector.load %arg1[%c136, %c0_20] : memref<184x128xf32, #tpu.memory_space<vmem>>, vector<1x128xf32>
    %cst_21 = arith.constant dense<0.000000e+00> : vector<64x128xf32>
    %146 = tpu.matmul %142, %143, %cst_21 {dimension_numbers = #tpu.dot_dimension_numbers<[1], [0], [0], [1], [0, 0, 1, 1], [], []>} : vector<64x32xf32>, vector<32x128xf32>, vector<64x128xf32> -> vector<64x128xf32>
    %147 = vector.broadcast %145 : vector<1x128xf32> to vector<64x128xf32>
    %148 = arith.addf %146, %147 : vector<64x128xf32>
    %cst_22 = arith.constant 0.000000e+00 : f32
    %149 = vector.broadcast %cst_22 : f32 to vector<8x32xf32>
    %cst_23 = arith.constant 0.000000e+00 : f32
    %150 = vector.broadcast %cst_23 : f32 to vector<8x32xf32>
    %151 = vector.extract_strided_slice %148 {offsets = [0, 0], sizes = [8, 128], strides = [1, 1]} : vector<64x128xf32> to vector<8x128xf32>
    %cst_24 = arith.constant dense<0.000000e+00> : vector<8x128xf32>
    %152 = tpu.matmul %149, %144, %cst_24 {dimension_numbers = #tpu.dot_dimension_numbers<[1], [0], [0], [1], [0, 0, 1, 1], [], []>} : vector<8x32xf32>, vector<32x128xf32>, vector<8x128xf32> -> vector<8x128xf32>
    %153 = arith.addf %151, %152 : vector<8x128xf32>
    %154 = arith.mulf %153, %2 : vector<8x128xf32>
    %155 = math.tanh %154 : vector<8x128xf32>
    %156 = arith.mulf %155, %2 : vector<8x128xf32>
    %157 = arith.addf %156, %4 : vector<8x128xf32>
    %158 = vector.extract_strided_slice %157 {offsets = [0, 0], sizes = [8, 32], strides = [1, 1]} : vector<8x128xf32> to vector<8x32xf32>
    %159 = vector.extract_strided_slice %157 {offsets = [0, 32], sizes = [8, 32], strides = [1, 1]} : vector<8x128xf32> to vector<8x32xf32>
    %160 = vector.extract_strided_slice %157 {offsets = [0, 64], sizes = [8, 32], strides = [1, 1]} : vector<8x128xf32> to vector<8x32xf32>
    %161 = vector.extract_strided_slice %157 {offsets = [0, 96], sizes = [8, 32], strides = [1, 1]} : vector<8x128xf32> to vector<8x32xf32>
    %162 = arith.mulf %159, %150 : vector<8x32xf32>
    %163 = arith.mulf %158, %161 : vector<8x32xf32>
    %164 = arith.addf %162, %163 : vector<8x32xf32>
    %165 = math.tanh %164 : vector<8x32xf32>
    %166 = arith.mulf %160, %165 : vector<8x32xf32>
    %167 = vector.extract_strided_slice %148 {offsets = [8, 0], sizes = [8, 128], strides = [1, 1]} : vector<64x128xf32> to vector<8x128xf32>
    %cst_25 = arith.constant dense<0.000000e+00> : vector<8x128xf32>
    %168 = tpu.matmul %166, %144, %cst_25 {dimension_numbers = #tpu.dot_dimension_numbers<[1], [0], [0], [1], [0, 0, 1, 1], [], []>} : vector<8x32xf32>, vector<32x128xf32>, vector<8x128xf32> -> vector<8x128xf32>
    %169 = arith.addf %167, %168 : vector<8x128xf32>
    %170 = arith.mulf %169, %2 : vector<8x128xf32>
    %171 = math.tanh %170 : vector<8x128xf32>
    %172 = arith.mulf %171, %2 : vector<8x128xf32>
    %173 = arith.addf %172, %4 : vector<8x128xf32>
    %174 = vector.extract_strided_slice %173 {offsets = [0, 0], sizes = [8, 32], strides = [1, 1]} : vector<8x128xf32> to vector<8x32xf32>
    %175 = vector.extract_strided_slice %173 {offsets = [0, 32], sizes = [8, 32], strides = [1, 1]} : vector<8x128xf32> to vector<8x32xf32>
    %176 = vector.extract_strided_slice %173 {offsets = [0, 64], sizes = [8, 32], strides = [1, 1]} : vector<8x128xf32> to vector<8x32xf32>
    %177 = vector.extract_strided_slice %173 {offsets = [0, 96], sizes = [8, 32], strides = [1, 1]} : vector<8x128xf32> to vector<8x32xf32>
    %178 = arith.mulf %175, %164 : vector<8x32xf32>
    %179 = arith.mulf %174, %177 : vector<8x32xf32>
    %180 = arith.addf %178, %179 : vector<8x32xf32>
    %181 = math.tanh %180 : vector<8x32xf32>
    %182 = arith.mulf %176, %181 : vector<8x32xf32>
    %183 = vector.extract_strided_slice %148 {offsets = [16, 0], sizes = [8, 128], strides = [1, 1]} : vector<64x128xf32> to vector<8x128xf32>
    %cst_26 = arith.constant dense<0.000000e+00> : vector<8x128xf32>
    %184 = tpu.matmul %182, %144, %cst_26 {dimension_numbers = #tpu.dot_dimension_numbers<[1], [0], [0], [1], [0, 0, 1, 1], [], []>} : vector<8x32xf32>, vector<32x128xf32>, vector<8x128xf32> -> vector<8x128xf32>
    %185 = arith.addf %183, %184 : vector<8x128xf32>
    %186 = arith.mulf %185, %2 : vector<8x128xf32>
    %187 = math.tanh %186 : vector<8x128xf32>
    %188 = arith.mulf %187, %2 : vector<8x128xf32>
    %189 = arith.addf %188, %4 : vector<8x128xf32>
    %190 = vector.extract_strided_slice %189 {offsets = [0, 0], sizes = [8, 32], strides = [1, 1]} : vector<8x128xf32> to vector<8x32xf32>
    %191 = vector.extract_strided_slice %189 {offsets = [0, 32], sizes = [8, 32], strides = [1, 1]} : vector<8x128xf32> to vector<8x32xf32>
    %192 = vector.extract_strided_slice %189 {offsets = [0, 64], sizes = [8, 32], strides = [1, 1]} : vector<8x128xf32> to vector<8x32xf32>
    %193 = vector.extract_strided_slice %189 {offsets = [0, 96], sizes = [8, 32], strides = [1, 1]} : vector<8x128xf32> to vector<8x32xf32>
    %194 = arith.mulf %191, %180 : vector<8x32xf32>
    %195 = arith.mulf %190, %193 : vector<8x32xf32>
    %196 = arith.addf %194, %195 : vector<8x32xf32>
    %197 = math.tanh %196 : vector<8x32xf32>
    %198 = arith.mulf %192, %197 : vector<8x32xf32>
    %199 = vector.extract_strided_slice %148 {offsets = [24, 0], sizes = [8, 128], strides = [1, 1]} : vector<64x128xf32> to vector<8x128xf32>
    %cst_27 = arith.constant dense<0.000000e+00> : vector<8x128xf32>
    %200 = tpu.matmul %198, %144, %cst_27 {dimension_numbers = #tpu.dot_dimension_numbers<[1], [0], [0], [1], [0, 0, 1, 1], [], []>} : vector<8x32xf32>, vector<32x128xf32>, vector<8x128xf32> -> vector<8x128xf32>
    %201 = arith.addf %199, %200 : vector<8x128xf32>
    %202 = arith.mulf %201, %2 : vector<8x128xf32>
    %203 = math.tanh %202 : vector<8x128xf32>
    %204 = arith.mulf %203, %2 : vector<8x128xf32>
    %205 = arith.addf %204, %4 : vector<8x128xf32>
    %206 = vector.extract_strided_slice %205 {offsets = [0, 0], sizes = [8, 32], strides = [1, 1]} : vector<8x128xf32> to vector<8x32xf32>
    %207 = vector.extract_strided_slice %205 {offsets = [0, 32], sizes = [8, 32], strides = [1, 1]} : vector<8x128xf32> to vector<8x32xf32>
    %208 = vector.extract_strided_slice %205 {offsets = [0, 64], sizes = [8, 32], strides = [1, 1]} : vector<8x128xf32> to vector<8x32xf32>
    %209 = vector.extract_strided_slice %205 {offsets = [0, 96], sizes = [8, 32], strides = [1, 1]} : vector<8x128xf32> to vector<8x32xf32>
    %210 = arith.mulf %207, %196 : vector<8x32xf32>
    %211 = arith.mulf %206, %209 : vector<8x32xf32>
    %212 = arith.addf %210, %211 : vector<8x32xf32>
    %213 = math.tanh %212 : vector<8x32xf32>
    %214 = arith.mulf %208, %213 : vector<8x32xf32>
    %215 = vector.extract_strided_slice %148 {offsets = [32, 0], sizes = [8, 128], strides = [1, 1]} : vector<64x128xf32> to vector<8x128xf32>
    %cst_28 = arith.constant dense<0.000000e+00> : vector<8x128xf32>
    %216 = tpu.matmul %214, %144, %cst_28 {dimension_numbers = #tpu.dot_dimension_numbers<[1], [0], [0], [1], [0, 0, 1, 1], [], []>} : vector<8x32xf32>, vector<32x128xf32>, vector<8x128xf32> -> vector<8x128xf32>
    %217 = arith.addf %215, %216 : vector<8x128xf32>
    %218 = arith.mulf %217, %2 : vector<8x128xf32>
    %219 = math.tanh %218 : vector<8x128xf32>
    %220 = arith.mulf %219, %2 : vector<8x128xf32>
    %221 = arith.addf %220, %4 : vector<8x128xf32>
    %222 = vector.extract_strided_slice %221 {offsets = [0, 0], sizes = [8, 32], strides = [1, 1]} : vector<8x128xf32> to vector<8x32xf32>
    %223 = vector.extract_strided_slice %221 {offsets = [0, 32], sizes = [8, 32], strides = [1, 1]} : vector<8x128xf32> to vector<8x32xf32>
    %224 = vector.extract_strided_slice %221 {offsets = [0, 64], sizes = [8, 32], strides = [1, 1]} : vector<8x128xf32> to vector<8x32xf32>
    %225 = vector.extract_strided_slice %221 {offsets = [0, 96], sizes = [8, 32], strides = [1, 1]} : vector<8x128xf32> to vector<8x32xf32>
    %226 = arith.mulf %223, %212 : vector<8x32xf32>
    %227 = arith.mulf %222, %225 : vector<8x32xf32>
    %228 = arith.addf %226, %227 : vector<8x32xf32>
    %229 = math.tanh %228 : vector<8x32xf32>
    %230 = arith.mulf %224, %229 : vector<8x32xf32>
    %231 = vector.extract_strided_slice %148 {offsets = [40, 0], sizes = [8, 128], strides = [1, 1]} : vector<64x128xf32> to vector<8x128xf32>
    %cst_29 = arith.constant dense<0.000000e+00> : vector<8x128xf32>
    %232 = tpu.matmul %230, %144, %cst_29 {dimension_numbers = #tpu.dot_dimension_numbers<[1], [0], [0], [1], [0, 0, 1, 1], [], []>} : vector<8x32xf32>, vector<32x128xf32>, vector<8x128xf32> -> vector<8x128xf32>
    %233 = arith.addf %231, %232 : vector<8x128xf32>
    %234 = arith.mulf %233, %2 : vector<8x128xf32>
    %235 = math.tanh %234 : vector<8x128xf32>
    %236 = arith.mulf %235, %2 : vector<8x128xf32>
    %237 = arith.addf %236, %4 : vector<8x128xf32>
    %238 = vector.extract_strided_slice %237 {offsets = [0, 0], sizes = [8, 32], strides = [1, 1]} : vector<8x128xf32> to vector<8x32xf32>
    %239 = vector.extract_strided_slice %237 {offsets = [0, 32], sizes = [8, 32], strides = [1, 1]} : vector<8x128xf32> to vector<8x32xf32>
    %240 = vector.extract_strided_slice %237 {offsets = [0, 64], sizes = [8, 32], strides = [1, 1]} : vector<8x128xf32> to vector<8x32xf32>
    %241 = vector.extract_strided_slice %237 {offsets = [0, 96], sizes = [8, 32], strides = [1, 1]} : vector<8x128xf32> to vector<8x32xf32>
    %242 = arith.mulf %239, %228 : vector<8x32xf32>
    %243 = arith.mulf %238, %241 : vector<8x32xf32>
    %244 = arith.addf %242, %243 : vector<8x32xf32>
    %245 = math.tanh %244 : vector<8x32xf32>
    %246 = arith.mulf %240, %245 : vector<8x32xf32>
    %247 = vector.extract_strided_slice %148 {offsets = [48, 0], sizes = [8, 128], strides = [1, 1]} : vector<64x128xf32> to vector<8x128xf32>
    %cst_30 = arith.constant dense<0.000000e+00> : vector<8x128xf32>
    %248 = tpu.matmul %246, %144, %cst_30 {dimension_numbers = #tpu.dot_dimension_numbers<[1], [0], [0], [1], [0, 0, 1, 1], [], []>} : vector<8x32xf32>, vector<32x128xf32>, vector<8x128xf32> -> vector<8x128xf32>
    %249 = arith.addf %247, %248 : vector<8x128xf32>
    %250 = arith.mulf %249, %2 : vector<8x128xf32>
    %251 = math.tanh %250 : vector<8x128xf32>
    %252 = arith.mulf %251, %2 : vector<8x128xf32>
    %253 = arith.addf %252, %4 : vector<8x128xf32>
    %254 = vector.extract_strided_slice %253 {offsets = [0, 0], sizes = [8, 32], strides = [1, 1]} : vector<8x128xf32> to vector<8x32xf32>
    %255 = vector.extract_strided_slice %253 {offsets = [0, 32], sizes = [8, 32], strides = [1, 1]} : vector<8x128xf32> to vector<8x32xf32>
    %256 = vector.extract_strided_slice %253 {offsets = [0, 64], sizes = [8, 32], strides = [1, 1]} : vector<8x128xf32> to vector<8x32xf32>
    %257 = vector.extract_strided_slice %253 {offsets = [0, 96], sizes = [8, 32], strides = [1, 1]} : vector<8x128xf32> to vector<8x32xf32>
    %258 = arith.mulf %255, %244 : vector<8x32xf32>
    %259 = arith.mulf %254, %257 : vector<8x32xf32>
    %260 = arith.addf %258, %259 : vector<8x32xf32>
    %261 = math.tanh %260 : vector<8x32xf32>
    %262 = arith.mulf %256, %261 : vector<8x32xf32>
    %263 = vector.extract_strided_slice %148 {offsets = [56, 0], sizes = [8, 128], strides = [1, 1]} : vector<64x128xf32> to vector<8x128xf32>
    %cst_31 = arith.constant dense<0.000000e+00> : vector<8x128xf32>
    %264 = tpu.matmul %262, %144, %cst_31 {dimension_numbers = #tpu.dot_dimension_numbers<[1], [0], [0], [1], [0, 0, 1, 1], [], []>} : vector<8x32xf32>, vector<32x128xf32>, vector<8x128xf32> -> vector<8x128xf32>
    %265 = arith.addf %263, %264 : vector<8x128xf32>
    %266 = arith.mulf %265, %2 : vector<8x128xf32>
    %267 = math.tanh %266 : vector<8x128xf32>
    %268 = arith.mulf %267, %2 : vector<8x128xf32>
    %269 = arith.addf %268, %4 : vector<8x128xf32>
    %270 = vector.extract_strided_slice %269 {offsets = [0, 0], sizes = [8, 32], strides = [1, 1]} : vector<8x128xf32> to vector<8x32xf32>
    %271 = vector.extract_strided_slice %269 {offsets = [0, 32], sizes = [8, 32], strides = [1, 1]} : vector<8x128xf32> to vector<8x32xf32>
    %272 = vector.extract_strided_slice %269 {offsets = [0, 64], sizes = [8, 32], strides = [1, 1]} : vector<8x128xf32> to vector<8x32xf32>
    %273 = vector.extract_strided_slice %269 {offsets = [0, 96], sizes = [8, 32], strides = [1, 1]} : vector<8x128xf32> to vector<8x32xf32>
    %274 = arith.mulf %271, %260 : vector<8x32xf32>
    %275 = arith.mulf %270, %273 : vector<8x32xf32>
    %276 = arith.addf %274, %275 : vector<8x32xf32>
    %277 = math.tanh %276 : vector<8x32xf32>
    %278 = arith.mulf %272, %277 : vector<8x32xf32>
    %c128 = arith.constant 128 : index
    %c0_32 = arith.constant 0 : index
    %279 = vector.load %arg1[%c128, %c0_32] : memref<184x128xf32, #tpu.memory_space<vmem>>, vector<8x32xf32>
    %c136_33 = arith.constant 136 : index
    %c0_34 = arith.constant 0 : index
    %280 = vector.load %arg1[%c136_33, %c0_34] : memref<184x128xf32, #tpu.memory_space<vmem>>, vector<1x32xf32>
    %c144 = arith.constant 144 : index
    %c0_35 = arith.constant 0 : index
    %281 = vector.load %arg1[%c144, %c0_35] : memref<184x128xf32, #tpu.memory_space<vmem>>, vector<32x5xf32>
    %c176 = arith.constant 176 : index
    %c0_36 = arith.constant 0 : index
    %282 = vector.load %arg1[%c176, %c0_36] : memref<184x128xf32, #tpu.memory_space<vmem>>, vector<1x5xf32>
    %283 = tpu.transpose %278, [1, 0] : vector<8x32xf32> -> vector<32x8xf32>
    %cst_37 = arith.constant dense<0.000000e+00> : vector<32x32xf32>
    %284 = tpu.matmul %283, %279, %cst_37 {dimension_numbers = #tpu.dot_dimension_numbers<[1], [0], [0], [1], [0, 0, 1, 1], [], []>} : vector<32x8xf32>, vector<8x32xf32>, vector<32x32xf32> -> vector<32x32xf32>
    %285 = vector.broadcast %280 : vector<1x32xf32> to vector<32x32xf32>
    %286 = arith.addf %284, %285 : vector<32x32xf32>
    %287 = math.tanh %286 : vector<32x32xf32>
    %cst_38 = arith.constant dense<0.000000e+00> : vector<32x5xf32>
    %288 = tpu.matmul %287, %281, %cst_38 {dimension_numbers = #tpu.dot_dimension_numbers<[1], [0], [0], [1], [0, 0, 1, 1], [], []>} : vector<32x32xf32>, vector<32x5xf32>, vector<32x5xf32> -> vector<32x5xf32>
    %289 = vector.broadcast %282 : vector<1x5xf32> to vector<32x5xf32>
    %290 = arith.addf %288, %289 : vector<32x5xf32>
    %cst_39 = arith.constant dense<0xFF800000> : vector<32xf32>
    %291 = vector.multi_reduction <maximumf>, %290, %cst_39 [1] : vector<32x5xf32> to vector<32xf32>
    %292 = vector.shape_cast %291 : vector<32xf32> to vector<32x1xf32>
    %293 = vector.broadcast %292 : vector<32x1xf32> to vector<32x5xf32>
    %294 = arith.subf %290, %293 : vector<32x5xf32>
    %295 = math.exp %294 : vector<32x5xf32>
    %cst_40 = arith.constant dense<0.000000e+00> : vector<32xf32>
    %296 = vector.multi_reduction <add>, %295, %cst_40 [1] : vector<32x5xf32> to vector<32xf32>
    %297 = vector.shape_cast %296 : vector<32xf32> to vector<32x1xf32>
    %298 = vector.broadcast %297 : vector<32x1xf32> to vector<32x5xf32>
    %299 = arith.divf %295, %298 : vector<32x5xf32>
    %c0_41 = arith.constant 0 : index
    %c0_42 = arith.constant 0 : index
    %300 = vector.load %arg2[%c0_41, %c0_42] : memref<32x5xf32, #tpu.memory_space<vmem>>, vector<32x5xf32>
    tpu.vector_store %arg2[%c0_41, %c0_42], %299 {strides = array<i32>} : memref<32x5xf32, #tpu.memory_space<vmem>>, vector<32x5xf32>,
    return
  }
}

</mosaic_0001>

<llo_original>
// kernel: _lambda_.1
$region0: #{_lambda_.1}
  #allocation0 [shape = 'u32[]', space=smem, size = 0x4, offset = 0x4, fixed_abs, tag = 'smem constant byte address 0x4 - core index']
  #allocation1 [shape = 'u32[144,128]{1,0:T(1,128)}', space=vmem, size = 0x12000, scoped, tag = 'internal scratch']
  %s0 = inlined_call_operand.vmem [shape: f32[64,16], index: 0, kind: input, shape index: {}]
  %s1 = inlined_call_operand.hbm [shape: f32[184,128], index: 1, kind: input, shape index: {}]
  %s2 = inlined_call_operand.vmem [shape: f32[32,5], index: 2, kind: output, shape index: {}]
  %s3 = sld [smem:[#allocation0]]
  $region22: #{_lambda_.1} parent=0
    _
  %s5 = ssub.s32 1, %s3
  %s6 = scalar_select 0, %s5, %s3
  $region1: #{_lambda_.1} parent=0
    #allocation2 [shape = 'u8[94208]{0}', space=vmem, size = 0x17000, scoped, tag = 'input window, operand 1, single buffered']
    #allocation3 [shape = 's32[1]{0}', space=sflag, size = 0x4, scoped, tag = 'scoped memory for _lambda_.1']
    %7 = vsyncpa [#allocation3], 0
    // Predicated region
    $region2: #{_lambda_.1} parent=1 // pred_check
      _
    $region3: #{_lambda_.1} parent=1 // pred_check_branch
      %9 = sbr.rel (0) target = $region5
    $region4: #{_lambda_.1} parent=1 // pred_region
      _
    $region5: #{_lambda_.1} parent=1 // pred_fallthru
      _
    // Predicated region
    $region6: #{_lambda_.1} parent=1 // pred_check
      _
    $region7: #{_lambda_.1} parent=1 // pred_check_branch
      %11 = sbr.rel (0) target = $region9
    $region8: #{_lambda_.1} parent=1 // pred_region
      %s13 = ssub.s32 2944, 2944
      %14 = vsyncadd [#allocation3], %s13
      %s15 = sshll.u32 [#allocation2], 4
      %s16 = int_to_ptr.vmem [resolvable:$true] %s15
      %21 = dma.hbm_to_vmem [thread:$0]  %s1, 2944, %s16, [#allocation3], 128, 128, 8
    $region9: #{_lambda_.1} parent=1 // pred_fallthru
      _
    // Predicated region
    $region10: #{_lambda_.1} parent=1 // pred_check
      _
    $region11: #{_lambda_.1} parent=1 // pred_check_branch
      %23 = sbr.rel (0) target = $region13
    $region12: #{_lambda_.1} parent=1 // pred_region
      %24 = dma.done [#allocation3], 2944
    $region13: #{_lambda_.1} parent=1 // pred_fallthru
      _
    %vm25 = vcmask 785408
    %v26 = vsel %vm25, 0.5, 1.0
    %v27 = vsel %vm25, 0.5, 0.0
    %v28 = vld [vmem:[%s0] sm:$0xff]
    %v29 = vld [vmem:[%s0 + $0x8] sm:$0xff]
    %v30 = vld [vmem:[%s0 + $0x10] sm:$0xff]
    %v31 = vld [vmem:[%s0 + $0x18] sm:$0xff]
    %v32 = vld [vmem:[%s0 + $0x20] sm:$0xff]
    %v33 = vld [vmem:[%s0 + $0x28] sm:$0xff]
    %v34 = vld [vmem:[%s0 + $0x30] sm:$0xff]
    %v35 = vld [vmem:[%s0 + $0x38] sm:$0xff]
    %v36 = vld [vmem:[#allocation2] sm:$0xff]
    %v37 = vld [vmem:[#allocation2 + $0x8] sm:$0xff]
    %v38 = vld [vmem:[#allocation2 + $0x10] sm:$0xff]
    %v39 = vld [vmem:[#allocation2 + $0x18] sm:$0xff]
    %v40 = vld [vmem:[#allocation2 + $0x20] sm:$0xff]
    %v41 = vld [vmem:[#allocation2 + $0x28] sm:$0xff]
    %v42 = vld [vmem:[#allocation2 + $0x30] sm:$0x1]
    %v43 = vlaneseq
    %v44 = vshrl.u32 %v43, 7
    %v45 = vsub.s32 0, %v44
    %v46 = vrot.slane %v42, %v45
    %vm47 = vcmask 130048
    %v49 = vsel %vm47, %v28, 0
    %v52 = vsel %vm47, %v29, 0
    %v55 = vsel %vm47, %v30, 0
    %v58 = vsel %vm47, %v31, 0
    %v61 = vsel %vm47, %v32, 0
    %v64 = vsel %vm47, %v33, 0
    %v67 = vsel %vm47, %v34, 0
    %v70 = vsel %vm47, %v35, 0
    %72 = vmatprep.subr.mxu0 0.0
    %73 = vmatpush1.msra.mxu0 %v36
    %74 = vmatprep.subr.mxu0 0.0
    %75 = vmatpush1.msra.mxu0 %v37
    %76 = vmatprep.subr.mxu0 0.0
    %77 = vmatpush1.msra.mxu0 0.0
    %78 = vmatprep.subr.mxu0 0.0
    %79 = vmatpush1.msra.mxu0 0.0
    %80 = vmatprep.subr.mxu0 0.0
    %81 = vmatpush1.msra.mxu0 0.0
    %82 = vmatprep.subr.mxu0 0.0
    %83 = vmatpush1.msra.mxu0 0.0
    %84 = vmatprep.subr.mxu0 0.0
    %85 = vmatpush1.msra.mxu0 0.0
    %86 = vmatprep.subr.mxu0 0.0
    %87 = vmatpush1.msra.mxu0 0.0
    %88 = vmatprep.subr.mxu0 0.0
    %89 = vmatpush1.msra.mxu0 0.0
    %90 = vmatprep.subr.mxu0 0.0
    %91 = vmatpush1.msra.mxu0 0.0
    %92 = vmatprep.subr.mxu0 0.0
    %93 = vmatpush1.msra.mxu0 0.0
    %94 = vmatprep.subr.mxu0 0.0
    %95 = vmatpush1.msra.mxu0 0.0
    %96 = vmatprep.subr.mxu0 0.0
    %97 = vmatpush1.msra.mxu0 0.0
    %98 = vmatprep.subr.mxu0 0.0
    %99 = vmatpush1.msra.mxu0 0.0
    %100 = vmatprep.subr.mxu0 0.0
    %101 = vmatpush1.msra.mxu0 0.0
    %102 = vmatprep.subr.mxu0 0.0
    %103 = vmatpush1.msra.mxu0 0.0
    %104 = vmatprep.subr.mxu0 0.0
    %105 = vmatpush1.msra.mxu0 0.0
    %106 = vmatprep.subr.mxu0 0.0
    %107 = vmatpush1.msra.mxu0 0.0
    %108 = vmatprep.subr.mxu0 0.0
    %109 = vmatpush1.msra.mxu0 0.0
    %110 = vmatprep.subr.mxu0 0.0
    %111 = vmatpush1.msra.mxu0 0.0
    %112 = vmatprep.subr.mxu0 0.0
    %113 = vmatpush1.msra.mxu0 0.0
    %114 = vmatprep.subr.mxu0 0.0
    %115 = vmatpush1.msra.mxu0 0.0
    %116 = vmatprep.subr.mxu0 0.0
    %117 = vmatpush1.msra.mxu0 0.0
    %118 = vmatprep.subr.mxu0 0.0
    %119 = vmatpush1.msra.mxu0 0.0
    %120 = vmatprep.subr.mxu0 0.0
    %121 = vmatpush1.msra.mxu0 0.0
    %122 = vmatprep.subr.mxu0 0.0
    %123 = vmatpush1.msra.mxu0 0.0
    %124 = vmatprep.subr.mxu0 0.0
    %125 = vmatpush1.msra.mxu0 0.0
    %126 = vmatprep.subr.mxu0 0.0
    %127 = vmatpush1.msra.mxu0 0.0
    %128 = vmatprep.subr.mxu0 0.0
    %129 = vmatpush1.msra.mxu0 0.0
    %130 = vmatprep.subr.mxu0 0.0
    %131 = vmatpush1.msra.mxu0 0.0
    %132 = vmatprep.subr.mxu0 0.0
    %133 = vmatpush1.msra.mxu0 0.0
    %134 = vmatprep.subr.mxu0 0.0
    %135 = vmatpush1.msra.mxu0 0.0
    %136 = vmatprep.mubr.f32.mxu0 0.0
    %137 = vmatmul.mubr.f32.gmra.mrb[0].mxu0 %v49
    %v138 = vpop.f32.mrb[0].mxu0
    %v139 = vadd.f32 %v46, %v138
    %v140 = vpop.f32.mrb[0].mxu0
    %141 = vmatprep.mubr.f32.mxu0 0.0
    %142 = vmatmul.mubr.f32.gmra.mrb[0].mxu0 %v52
    %v143 = vpop.f32.mrb[0].mxu0
    %v144 = vadd.f32 %v46, %v143
    %v145 = vpop.f32.mrb[0].mxu0
    %146 = vmatprep.mubr.f32.mxu0 0.0
    %147 = vmatmul.mubr.f32.gmra.mrb[0].mxu0 %v55
    %v148 = vpop.f32.mrb[0].mxu0
    %v149 = vadd.f32 %v46, %v148
    %v150 = vpop.f32.mrb[0].mxu0
    %151 = vmatprep.mubr.f32.mxu0 0.0
    %152 = vmatmul.mubr.f32.gmra.mrb[0].mxu0 %v58
    %v153 = vpop.f32.mrb[0].mxu0
    %v154 = vadd.f32 %v46, %v153
    %v155 = vpop.f32.mrb[0].mxu0
    %156 = vmatprep.mubr.f32.mxu0 0.0
    %157 = vmatmul.mubr.f32.gmra.mrb[0].mxu0 %v61
    %v158 = vpop.f32.mrb[0].mxu0
    %v159 = vadd.f32 %v46, %v158
    %v160 = vpop.f32.mrb[0].mxu0
    %161 = vmatprep.mubr.f32.mxu0 0.0
    %162 = vmatmul.mubr.f32.gmra.mrb[0].mxu0 %v64
    %v163 = vpop.f32.mrb[0].mxu0
    %v164 = vadd.f32 %v46, %v163
    %v165 = vpop.f32.mrb[0].mxu0
    %166 = vmatprep.mubr.f32.mxu0 0.0
    %167 = vmatmul.mubr.f32.gmra.mrb[0].mxu0 %v67
    %v168 = vpop.f32.mrb[0].mxu0
    %v169 = vadd.f32 %v46, %v168
    %v170 = vpop.f32.mrb[0].mxu0
    %171 = vmatprep.mubr.f32.mxu0 0.0
    %172 = vmatmul.mubr.f32.gmra.mrb[0].mxu0 %v70
    %v173 = vpop.f32.mrb[0].mxu0
    %v174 = vadd.f32 %v46, %v173
    %v175 = vpop.f32.mrb[0].mxu0
    %176 = vdwg.mxu0
    %vm177 = vcmask 261120
    %v179 = vsel %vm177, 0.0, 0
    %181 = vmatprep.subr.mxu0 0.0
    %182 = vmatpush1.msra.mxu0 %v38
    %183 = vmatprep.subr.mxu0 0.0
    %184 = vmatpush1.msra.mxu0 %v39
    %185 = vmatprep.subr.mxu0 0.0
    %186 = vmatpush1.msra.mxu0 %v40
    %187 = vmatprep.subr.mxu0 0.0
    %188 = vmatpush1.msra.mxu0 %v41
    %189 = vmatprep.subr.mxu0 0.0
    %190 = vmatpush1.msra.mxu0 0.0
    %191 = vmatprep.subr.mxu0 0.0
    %192 = vmatpush1.msra.mxu0 0.0
    %193 = vmatprep.subr.mxu0 0.0
    %194 = vmatpush1.msra.mxu0 0.0
    %195 = vmatprep.subr.mxu0 0.0
    %196 = vmatpush1.msra.mxu0 0.0
    %197 = vmatprep.subr.mxu0 0.0
    %198 = vmatpush1.msra.mxu0 0.0
    %199 = vmatprep.subr.mxu0 0.0
    %200 = vmatpush1.msra.mxu0 0.0
    %201 = vmatprep.subr.mxu0 0.0
    %202 = vmatpush1.msra.mxu0 0.0
    %203 = vmatprep.subr.mxu0 0.0
    %204 = vmatpush1.msra.mxu0 0.0
    %205 = vmatprep.subr.mxu0 0.0
    %206 = vmatpush1.msra.mxu0 0.0
    %207 = vmatprep.subr.mxu0 0.0
    %208 = vmatpush1.msra.mxu0 0.0
    %209 = vmatprep.subr.mxu0 0.0
    %210 = vmatpush1.msra.mxu0 0.0
    %211 = vmatprep.subr.mxu0 0.0
    %212 = vmatpush1.msra.mxu0 0.0
    %213 = vmatprep.subr.mxu0 0.0
    %214 = vmatpush1.msra.mxu0 0.0
    %215 = vmatprep.subr.mxu0 0.0
    %216 = vmatpush1.msra.mxu0 0.0
    %217 = vmatprep.subr.mxu0 0.0
    %218 = vmatpush1.msra.mxu0 0.0
    %219 = vmatprep.subr.mxu0 0.0
    %220 = vmatpush1.msra.mxu0 0.0
    %221 = vmatprep.subr.mxu0 0.0
    %222 = vmatpush1.msra.mxu0 0.0
    %223 = vmatprep.subr.mxu0 0.0
    %224 = vmatpush1.msra.mxu0 0.0
    %225 = vmatprep.subr.mxu0 0.0
    %226 = vmatpush1.msra.mxu0 0.0
    %227 = vmatprep.subr.mxu0 0.0
    %228 = vmatpush1.msra.mxu0 0.0
    %229 = vmatprep.subr.mxu0 0.0
    %230 = vmatpush1.msra.mxu0 0.0
    %231 = vmatprep.subr.mxu0 0.0
    %232 = vmatpush1.msra.mxu0 0.0
    %233 = vmatprep.subr.mxu0 0.0
    %234 = vmatpush1.msra.mxu0 0.0
    %235 = vmatprep.subr.mxu0 0.0
    %236 = vmatpush1.msra.mxu0 0.0
    %237 = vmatprep.subr.mxu0 0.0
    %238 = vmatpush1.msra.mxu0 0.0
    %239 = vmatprep.subr.mxu0 0.0
    %240 = vmatpush1.msra.mxu0 0.0
    %241 = vmatprep.subr.mxu0 0.0
    %242 = vmatpush1.msra.mxu0 0.0
    %243 = vmatprep.subr.mxu0 0.0
    %244 = vmatpush1.msra.mxu0 0.0
    %245 = vmatprep.mubr.f32.mxu0 0.0
    %246 = vmatmul.mubr.f32.gmra.mrb[0].mxu0 %v179
    %v247 = vpop.f32.mrb[0].mxu0
    %v248 = vadd.f32 0.0, %v247
    %v249 = vpop.f32.mrb[0].mxu0
    %250 = vdwg.mxu0
    %v251 = vadd.f32 %v139, %v248
    %v252 = vmul.f32 %v251, %v26
    %v253 = vtanh.pop %v252
    %v254 = vmul.f32 %v253, %v26
    %v255 = vadd.f32 %v254, %v27
    %v256 = vmul.f32 %v255, 0.0
    %258 = vrot.lane.b32.xlu0 %v255, 32
    %v259 = vpop.permute.xlu0 %258
    %v261 = vmul.f32 %v255, %v259
    %263 = vrot.lane.b32.xlu0 %v261, 32
    %v264 = vpop.permute.xlu0 %263
    %v266 = vadd.f32 %v256, %v264
    %v267 = vtanh.pop %v266
    %269 = vrot.lane.b32.xlu0 %v267, 32
    %v270 = vpop.permute.xlu0 %269
    %v272 = vmul.f32 %v255, %v270
    %274 = vrot.lane.b32.xlu0 %v272, 64
    %v275 = vpop.permute.xlu0 %274
    %v276 = vsel %vm177, %v275, 0
    %278 = vmatprep.subr.mxu0 0.0
    %279 = vmatpush1.msra.mxu0 %v38
    %280 = vmatprep.subr.mxu0 0.0
    %281 = vmatpush1.msra.mxu0 %v39
    %282 = vmatprep.subr.mxu0 0.0
    %283 = vmatpush1.msra.mxu0 %v40
    %284 = vmatprep.subr.mxu0 0.0
    %285 = vmatpush1.msra.mxu0 %v41
    %286 = vmatprep.subr.mxu0 0.0
    %287 = vmatpush1.msra.mxu0 0.0
    %288 = vmatprep.subr.mxu0 0.0
    %289 = vmatpush1.msra.mxu0 0.0
    %290 = vmatprep.subr.mxu0 0.0
    %291 = vmatpush1.msra.mxu0 0.0
    %292 = vmatprep.subr.mxu0 0.0
    %293 = vmatpush1.msra.mxu0 0.0
    %294 = vmatprep.subr.mxu0 0.0
    %295 = vmatpush1.msra.mxu0 0.0
    %296 = vmatprep.subr.mxu0 0.0
    %297 = vmatpush1.msra.mxu0 0.0
    %298 = vmatprep.subr.mxu0 0.0
    %299 = vmatpush1.msra.mxu0 0.0
    %300 = vmatprep.subr.mxu0 0.0
    %301 = vmatpush1.msra.mxu0 0.0
    %302 = vmatprep.subr.mxu0 0.0
    %303 = vmatpush1.msra.mxu0 0.0
    %304 = vmatprep.subr.mxu0 0.0
    %305 = vmatpush1.msra.mxu0 0.0
    %306 = vmatprep.subr.mxu0 0.0
    %307 = vmatpush1.msra.mxu0 0.0
    %308 = vmatprep.subr.mxu0 0.0
    %309 = vmatpush1.msra.mxu0 0.0
    %310 = vmatprep.subr.mxu0 0.0
    %311 = vmatpush1.msra.mxu0 0.0
    %312 = vmatprep.subr.mxu0 0.0
    %313 = vmatpush1.msra.mxu0 0.0
    %314 = vmatprep.subr.mxu0 0.0
    %315 = vmatpush1.msra.mxu0 0.0
    %316 = vmatprep.subr.mxu0 0.0
    %317 = vmatpush1.msra.mxu0 0.0
    %318 = vmatprep.subr.mxu0 0.0
    %319 = vmatpush1.msra.mxu0 0.0
    %320 = vmatprep.subr.mxu0 0.0
    %321 = vmatpush1.msra.mxu0 0.0
    %322 = vmatprep.subr.mxu0 0.0
    %323 = vmatpush1.msra.mxu0 0.0
    %324 = vmatprep.subr.mxu0 0.0
    %325 = vmatpush1.msra.mxu0 0.0
    %326 = vmatprep.subr.mxu0 0.0
    %327 = vmatpush1.msra.mxu0 0.0
    %328 = vmatprep.subr.mxu0 0.0
    %329 = vmatpush1.msra.mxu0 0.0
    %330 = vmatprep.subr.mxu0 0.0
    %331 = vmatpush1.msra.mxu0 0.0
    %332 = vmatprep.subr.mxu0 0.0
    %333 = vmatpush1.msra.mxu0 0.0
    %334 = vmatprep.subr.mxu0 0.0
    %335 = vmatpush1.msra.mxu0 0.0
    %336 = vmatprep.subr.mxu0 0.0
    %337 = vmatpush1.msra.mxu0 0.0
    %338 = vmatprep.subr.mxu0 0.0
    %339 = vmatpush1.msra.mxu0 0.0
    %340 = vmatprep.subr.mxu0 0.0
    %341 = vmatpush1.msra.mxu0 0.0
    %342 = vmatprep.mubr.f32.mxu0 0.0
    %343 = vmatmul.mubr.f32.gmra.mrb[0].mxu0 %v276
    %v344 = vpop.f32.mrb[0].mxu0
    %v345 = vadd.f32 0.0, %v344
    %v346 = vpop.f32.mrb[0].mxu0
    %347 = vdwg.mxu0
    %v348 = vadd.f32 %v144, %v345
    %v349 = vmul.f32 %v348, %v26
    %v350 = vtanh.pop %v349
    %v351 = vmul.f32 %v350, %v26
    %v352 = vadd.f32 %v351, %v27
    %v353 = vmul.f32 %v352, %v266
    %355 = vrot.lane.b32.xlu0 %v352, 32
    %v356 = vpop.permute.xlu0 %355
    %v358 = vmul.f32 %v352, %v356
    %360 = vrot.lane.b32.xlu0 %v358, 32
    %v361 = vpop.permute.xlu0 %360
    %v363 = vadd.f32 %v353, %v361
    %v364 = vtanh.pop %v363
    %366 = vrot.lane.b32.xlu0 %v364, 32
    %v367 = vpop.permute.xlu0 %366
    %v369 = vmul.f32 %v352, %v367
    %371 = vrot.lane.b32.xlu0 %v369, 64
    %v372 = vpop.permute.xlu0 %371
    %v373 = vsel %vm177, %v372, 0
    %375 = vmatprep.subr.mxu0 0.0
    %376 = vmatpush1.msra.mxu0 %v38
    %377 = vmatprep.subr.mxu0 0.0
    %378 = vmatpush1.msra.mxu0 %v39
    %379 = vmatprep.subr.mxu0 0.0
    %380 = vmatpush1.msra.mxu0 %v40
    %381 = vmatprep.subr.mxu0 0.0
    %382 = vmatpush1.msra.mxu0 %v41
    %383 = vmatprep.subr.mxu0 0.0
    %384 = vmatpush1.msra.mxu0 0.0
    %385 = vmatprep.subr.mxu0 0.0
    %386 = vmatpush1.msra.mxu0 0.0
    %387 = vmatprep.subr.mxu0 0.0
    %388 = vmatpush1.msra.mxu0 0.0
    %389 = vmatprep.subr.mxu0 0.0
    %390 = vmatpush1.msra.mxu0 0.0
    %391 = vmatprep.subr.mxu0 0.0
    %392 = vmatpush1.msra.mxu0 0.0
    %393 = vmatprep.subr.mxu0 0.0
    %394 = vmatpush1.msra.mxu0 0.0
    %395 = vmatprep.subr.mxu0 0.0
    %396 = vmatpush1.msra.mxu0 0.0
    %397 = vmatprep.subr.mxu0 0.0
    %398 = vmatpush1.msra.mxu0 0.0
    %399 = vmatprep.subr.mxu0 0.0
    %400 = vmatpush1.msra.mxu0 0.0
    %401 = vmatprep.subr.mxu0 0.0
    %402 = vmatpush1.msra.mxu0 0.0
    %403 = vmatprep.subr.mxu0 0.0
    %404 = vmatpush1.msra.mxu0 0.0
    %405 = vmatprep.subr.mxu0 0.0
    %406 = vmatpush1.msra.mxu0 0.0
    %407 = vmatprep.subr.mxu0 0.0
    %408 = vmatpush1.msra.mxu0 0.0
    %409 = vmatprep.subr.mxu0 0.0
    %410 = vmatpush1.msra.mxu0 0.0
    %411 = vmatprep.subr.mxu0 0.0
    %412 = vmatpush1.msra.mxu0 0.0
    %413 = vmatprep.subr.mxu0 0.0
    %414 = vmatpush1.msra.mxu0 0.0
    %415 = vmatprep.subr.mxu0 0.0
    %416 = vmatpush1.msra.mxu0 0.0
    %417 = vmatprep.subr.mxu0 0.0
    %418 = vmatpush1.msra.mxu0 0.0
    %419 = vmatprep.subr.mxu0 0.0
    %420 = vmatpush1.msra.mxu0 0.0
    %421 = vmatprep.subr.mxu0 0.0
    %422 = vmatpush1.msra.mxu0 0.0
    %423 = vmatprep.subr.mxu0 0.0
    %424 = vmatpush1.msra.mxu0 0.0
    %425 = vmatprep.subr.mxu0 0.0
    %426 = vmatpush1.msra.mxu0 0.0
    %427 = vmatprep.subr.mxu0 0.0
    %428 = vmatpush1.msra.mxu0 0.0
    %429 = vmatprep.subr.mxu0 0.0
    %430 = vmatpush1.msra.mxu0 0.0
    %431 = vmatprep.subr.mxu0 0.0
    %432 = vmatpush1.msra.mxu0 0.0
    %433 = vmatprep.subr.mxu0 0.0
    %434 = vmatpush1.msra.mxu0 0.0
    %435 = vmatprep.subr.mxu0 0.0
    %436 = vmatpush1.msra.mxu0 0.0
    %437 = vmatprep.subr.mxu0 0.0
    %438 = vmatpush1.msra.mxu0 0.0
    %439 = vmatprep.mubr.f32.mxu0 0.0
    %440 = vmatmul.mubr.f32.gmra.mrb[0].mxu0 %v373
    %v441 = vpop.f32.mrb[0].mxu0
    %v442 = vadd.f32 0.0, %v441
    %v443 = vpop.f32.mrb[0].mxu0
    %444 = vdwg.mxu0
    %v445 = vadd.f32 %v149, %v442
    %v446 = vmul.f32 %v445, %v26
    %v447 = vtanh.pop %v446
    %v448 = vmul.f32 %v447, %v26
    %v449 = vadd.f32 %v448, %v27
    %v450 = vmul.f32 %v449, %v363
    %452 = vrot.lane.b32.xlu0 %v449, 32
    %v453 = vpop.permute.xlu0 %452
    %v455 = vmul.f32 %v449, %v453
    %457 = vrot.lane.b32.xlu0 %v455, 32
    %v458 = vpop.permute.xlu0 %457
    %v460 = vadd.f32 %v450, %v458
    %v461 = vtanh.pop %v460
    %463 = vrot.lane.b32.xlu0 %v461, 32
    %v464 = vpop.permute.xlu0 %463
    %v466 = vmul.f32 %v449, %v464
    %468 = vrot.lane.b32.xlu0 %v466, 64
    %v469 = vpop.permute.xlu0 %468
    %v470 = vsel %vm177, %v469, 0
    %472 = vmatprep.subr.mxu0 0.0
    %473 = vmatpush1.msra.mxu0 %v38
    %474 = vmatprep.subr.mxu0 0.0
    %475 = vmatpush1.msra.mxu0 %v39
    %476 = vmatprep.subr.mxu0 0.0
    %477 = vmatpush1.msra.mxu0 %v40
    %478 = vmatprep.subr.mxu0 0.0
    %479 = vmatpush1.msra.mxu0 %v41
    %480 = vmatprep.subr.mxu0 0.0
    %481 = vmatpush1.msra.mxu0 0.0
    %482 = vmatprep.subr.mxu0 0.0
    %483 = vmatpush1.msra.mxu0 0.0
    %484 = vmatprep.subr.mxu0 0.0
    %485 = vmatpush1.msra.mxu0 0.0
    %486 = vmatprep.subr.mxu0 0.0
    %487 = vmatpush1.msra.mxu0 0.0
    %488 = vmatprep.subr.mxu0 0.0
    %489 = vmatpush1.msra.mxu0 0.0
    %490 = vmatprep.subr.mxu0 0.0
    %491 = vmatpush1.msra.mxu0 0.0
    %492 = vmatprep.subr.mxu0 0.0
    %493 = vmatpush1.msra.mxu0 0.0
    %494 = vmatprep.subr.mxu0 0.0
    %495 = vmatpush1.msra.mxu0 0.0
    %496 = vmatprep.subr.mxu0 0.0
    %497 = vmatpush1.msra.mxu0 0.0
    %498 = vmatprep.subr.mxu0 0.0
    %499 = vmatpush1.msra.mxu0 0.0
    %500 = vmatprep.subr.mxu0 0.0
    %501 = vmatpush1.msra.mxu0 0.0
    %502 = vmatprep.subr.mxu0 0.0
    %503 = vmatpush1.msra.mxu0 0.0
    %504 = vmatprep.subr.mxu0 0.0
    %505 = vmatpush1.msra.mxu0 0.0
    %506 = vmatprep.subr.mxu0 0.0
    %507 = vmatpush1.msra.mxu0 0.0
    %508 = vmatprep.subr.mxu0 0.0
    %509 = vmatpush1.msra.mxu0 0.0
    %510 = vmatprep.subr.mxu0 0.0
    %511 = vmatpush1.msra.mxu0 0.0
    %512 = vmatprep.subr.mxu0 0.0
    %513 = vmatpush1.msra.mxu0 0.0
    %514 = vmatprep.subr.mxu0 0.0
    %515 = vmatpush1.msra.mxu0 0.0
    %516 = vmatprep.subr.mxu0 0.0
    %517 = vmatpush1.msra.mxu0 0.0
    %518 = vmatprep.subr.mxu0 0.0
    %519 = vmatpush1.msra.mxu0 0.0
    %520 = vmatprep.subr.mxu0 0.0
    %521 = vmatpush1.msra.mxu0 0.0
    %522 = vmatprep.subr.mxu0 0.0
    %523 = vmatpush1.msra.mxu0 0.0
    %524 = vmatprep.subr.mxu0 0.0
    %525 = vmatpush1.msra.mxu0 0.0
    %526 = vmatprep.subr.mxu0 0.0
    %527 = vmatpush1.msra.mxu0 0.0
    %528 = vmatprep.subr.mxu0 0.0
    %529 = vmatpush1.msra.mxu0 0.0
    %530 = vmatprep.subr.mxu0 0.0
    %531 = vmatpush1.msra.mxu0 0.0
    %532 = vmatprep.subr.mxu0 0.0
    %533 = vmatpush1.msra.mxu0 0.0
    %534 = vmatprep.subr.mxu0 0.0
    %535 = vmatpush1.msra.mxu0 0.0
    %536 = vmatprep.mubr.f32.mxu0 0.0
    %537 = vmatmul.mubr.f32.gmra.mrb[0].mxu0 %v470
    %v538 = vpop.f32.mrb[0].mxu0
    %v539 = vadd.f32 0.0, %v538
    %v540 = vpop.f32.mrb[0].mxu0
    %541 = vdwg.mxu0
    %v542 = vadd.f32 %v154, %v539
    %v543 = vmul.f32 %v542, %v26
    %v544 = vtanh.pop %v543
    %v545 = vmul.f32 %v544, %v26
    %v546 = vadd.f32 %v545, %v27
    %v547 = vmul.f32 %v546, %v460
    %549 = vrot.lane.b32.xlu0 %v546, 32
    %v550 = vpop.permute.xlu0 %549
    %v552 = vmul.f32 %v546, %v550
    %554 = vrot.lane.b32.xlu0 %v552, 32
    %v555 = vpop.permute.xlu0 %554
    %v557 = vadd.f32 %v547, %v555
    %v558 = vtanh.pop %v557
    %560 = vrot.lane.b32.xlu0 %v558, 32
    %v561 = vpop.permute.xlu0 %560
    %v563 = vmul.f32 %v546, %v561
    %565 = vrot.lane.b32.xlu0 %v563, 64
    %v566 = vpop.permute.xlu0 %565
    %v567 = vsel %vm177, %v566, 0
    %569 = vmatprep.subr.mxu0 0.0
    %570 = vmatpush1.msra.mxu0 %v38
    %571 = vmatprep.subr.mxu0 0.0
    %572 = vmatpush1.msra.mxu0 %v39
    %573 = vmatprep.subr.mxu0 0.0
    %574 = vmatpush1.msra.mxu0 %v40
    %575 = vmatprep.subr.mxu0 0.0
    %576 = vmatpush1.msra.mxu0 %v41
    %577 = vmatprep.subr.mxu0 0.0
    %578 = vmatpush1.msra.mxu0 0.0
    %579 = vmatprep.subr.mxu0 0.0
    %580 = vmatpush1.msra.mxu0 0.0
    %581 = vmatprep.subr.mxu0 0.0
    %582 = vmatpush1.msra.mxu0 0.0
    %583 = vmatprep.subr.mxu0 0.0
    %584 = vmatpush1.msra.mxu0 0.0
    %585 = vmatprep.subr.mxu0 0.0
    %586 = vmatpush1.msra.mxu0 0.0
    %587 = vmatprep.subr.mxu0 0.0
    %588 = vmatpush1.msra.mxu0 0.0
    %589 = vmatprep.subr.mxu0 0.0
    %590 = vmatpush1.msra.mxu0 0.0
    %591 = vmatprep.subr.mxu0 0.0
    %592 = vmatpush1.msra.mxu0 0.0
    %593 = vmatprep.subr.mxu0 0.0
    %594 = vmatpush1.msra.mxu0 0.0
    %595 = vmatprep.subr.mxu0 0.0
    %596 = vmatpush1.msra.mxu0 0.0
    %597 = vmatprep.subr.mxu0 0.0
    %598 = vmatpush1.msra.mxu0 0.0
    %599 = vmatprep.subr.mxu0 0.0
    %600 = vmatpush1.msra.mxu0 0.0
    %601 = vmatprep.subr.mxu0 0.0
    %602 = vmatpush1.msra.mxu0 0.0
    %603 = vmatprep.subr.mxu0 0.0
    %604 = vmatpush1.msra.mxu0 0.0
    %605 = vmatprep.subr.mxu0 0.0
    %606 = vmatpush1.msra.mxu0 0.0
    %607 = vmatprep.subr.mxu0 0.0
    %608 = vmatpush1.msra.mxu0 0.0
    %609 = vmatprep.subr.mxu0 0.0
    %610 = vmatpush1.msra.mxu0 0.0
    %611 = vmatprep.subr.mxu0 0.0
    %612 = vmatpush1.msra.mxu0 0.0
    %613 = vmatprep.subr.mxu0 0.0
    %614 = vmatpush1.msra.mxu0 0.0
    %615 = vmatprep.subr.mxu0 0.0
    %616 = vmatpush1.msra.mxu0 0.0
    %617 = vmatprep.subr.mxu0 0.0
    %618 = vmatpush1.msra.mxu0 0.0
    %619 = vmatprep.subr.mxu0 0.0
    %620 = vmatpush1.msra.mxu0 0.0
    %621 = vmatprep.subr.mxu0 0.0
    %622 = vmatpush1.msra.mxu0 0.0
    %623 = vmatprep.subr.mxu0 0.0
    %624 = vmatpush1.msra.mxu0 0.0
    %625 = vmatprep.subr.mxu0 0.0
    %626 = vmatpush1.msra.mxu0 0.0
    %627 = vmatprep.subr.mxu0 0.0
    %628 = vmatpush1.msra.mxu0 0.0
    %629 = vmatprep.subr.mxu0 0.0
    %630 = vmatpush1.msra.mxu0 0.0
    %631 = vmatprep.subr.mxu0 0.0
    %632 = vmatpush1.msra.mxu0 0.0
    %633 = vmatprep.mubr.f32.mxu0 0.0
    %634 = vmatmul.mubr.f32.gmra.mrb[0].mxu0 %v567
    %v635 = vpop.f32.mrb[0].mxu0
    %v636 = vadd.f32 0.0, %v635
    %v637 = vpop.f32.mrb[0].mxu0
    %638 = vdwg.mxu0
    %v639 = vadd.f32 %v159, %v636
    %v640 = vmul.f32 %v639, %v26
    %v641 = vtanh.pop %v640
    %v642 = vmul.f32 %v641, %v26
    %v643 = vadd.f32 %v642, %v27
    %v644 = vmul.f32 %v643, %v557
    %646 = vrot.lane.b32.xlu0 %v643, 32
    %v647 = vpop.permute.xlu0 %646
    %v649 = vmul.f32 %v643, %v647
    %651 = vrot.lane.b32.xlu0 %v649, 32
    %v652 = vpop.permute.xlu0 %651
    %v654 = vadd.f32 %v644, %v652
    %v655 = vtanh.pop %v654
    %657 = vrot.lane.b32.xlu0 %v655, 32
    %v658 = vpop.permute.xlu0 %657
    %v660 = vmul.f32 %v643, %v658
    %662 = vrot.lane.b32.xlu0 %v660, 64
    %v663 = vpop.permute.xlu0 %662
    %v664 = vsel %vm177, %v663, 0
    %666 = vmatprep.subr.mxu0 0.0
    %667 = vmatpush1.msra.mxu0 %v38
    %668 = vmatprep.subr.mxu0 0.0
    %669 = vmatpush1.msra.mxu0 %v39
    %670 = vmatprep.subr.mxu0 0.0
    %671 = vmatpush1.msra.mxu0 %v40
    %672 = vmatprep.subr.mxu0 0.0
    %673 = vmatpush1.msra.mxu0 %v41
    %674 = vmatprep.subr.mxu0 0.0
    %675 = vmatpush1.msra.mxu0 0.0
    %676 = vmatprep.subr.mxu0 0.0
    %677 = vmatpush1.msra.mxu0 0.0
    %678 = vmatprep.subr.mxu0 0.0
    %679 = vmatpush1.msra.mxu0 0.0
    %680 = vmatprep.subr.mxu0 0.0
    %681 = vmatpush1.msra.mxu0 0.0
    %682 = vmatprep.subr.mxu0 0.0
    %683 = vmatpush1.msra.mxu0 0.0
    %684 = vmatprep.subr.mxu0 0.0
    %685 = vmatpush1.msra.mxu0 0.0
    %686 = vmatprep.subr.mxu0 0.0
    %687 = vmatpush1.msra.mxu0 0.0
    %688 = vmatprep.subr.mxu0 0.0
    %689 = vmatpush1.msra.mxu0 0.0
    %690 = vmatprep.subr.mxu0 0.0
    %691 = vmatpush1.msra.mxu0 0.0
    %692 = vmatprep.subr.mxu0 0.0
    %693 = vmatpush1.msra.mxu0 0.0
    %694 = vmatprep.subr.mxu0 0.0
    %695 = vmatpush1.msra.mxu0 0.0
    %696 = vmatprep.subr.mxu0 0.0
    %697 = vmatpush1.msra.mxu0 0.0
    %698 = vmatprep.subr.mxu0 0.0
    %699 = vmatpush1.msra.mxu0 0.0
    %700 = vmatprep.subr.mxu0 0.0
    %701 = vmatpush1.msra.mxu0 0.0
    %702 = vmatprep.subr.mxu0 0.0
    %703 = vmatpush1.msra.mxu0 0.0
    %704 = vmatprep.subr.mxu0 0.0
    %705 = vmatpush1.msra.mxu0 0.0
    %706 = vmatprep.subr.mxu0 0.0
    %707 = vmatpush1.msra.mxu0 0.0
    %708 = vmatprep.subr.mxu0 0.0
    %709 = vmatpush1.msra.mxu0 0.0
    %710 = vmatprep.subr.mxu0 0.0
    %711 = vmatpush1.msra.mxu0 0.0
    %712 = vmatprep.subr.mxu0 0.0
    %713 = vmatpush1.msra.mxu0 0.0
    %714 = vmatprep.subr.mxu0 0.0
    %715 = vmatpush1.msra.mxu0 0.0
    %716 = vmatprep.subr.mxu0 0.0
    %717 = vmatpush1.msra.mxu0 0.0
    %718 = vmatprep.subr.mxu0 0.0
    %719 = vmatpush1.msra.mxu0 0.0
    %720 = vmatprep.subr.mxu0 0.0
    %721 = vmatpush1.msra.mxu0 0.0
    %722 = vmatprep.subr.mxu0 0.0
    %723 = vmatpush1.msra.mxu0 0.0
    %724 = vmatprep.subr.mxu0 0.0
    %725 = vmatpush1.msra.mxu0 0.0
    %726 = vmatprep.subr.mxu0 0.0
    %727 = vmatpush1.msra.mxu0 0.0
    %728 = vmatprep.subr.mxu0 0.0
    %729 = vmatpush1.msra.mxu0 0.0
    %730 = vmatprep.mubr.f32.mxu0 0.0
    %731 = vmatmul.mubr.f32.gmra.mrb[0].mxu0 %v664
    %v732 = vpop.f32.mrb[0].mxu0
    %v733 = vadd.f32 0.0, %v732
    %v734 = vpop.f32.mrb[0].mxu0
    %735 = vdwg.mxu0
    %v736 = vadd.f32 %v164, %v733
    %v737 = vmul.f32 %v736, %v26
    %v738 = vtanh.pop %v737
    %v739 = vmul.f32 %v738, %v26
    %v740 = vadd.f32 %v739, %v27
    %v741 = vmul.f32 %v740, %v654
    %743 = vrot.lane.b32.xlu0 %v740, 32
    %v744 = vpop.permute.xlu0 %743
    %v746 = vmul.f32 %v740, %v744
    %748 = vrot.lane.b32.xlu0 %v746, 32
    %v749 = vpop.permute.xlu0 %748
    %v751 = vadd.f32 %v741, %v749
    %v752 = vtanh.pop %v751
    %754 = vrot.lane.b32.xlu0 %v752, 32
    %v755 = vpop.permute.xlu0 %754
    %v757 = vmul.f32 %v740, %v755
    %759 = vrot.lane.b32.xlu0 %v757, 64
    %v760 = vpop.permute.xlu0 %759
    %v761 = vsel %vm177, %v760, 0
    %763 = vmatprep.subr.mxu0 0.0
    %764 = vmatpush1.msra.mxu0 %v38
    %765 = vmatprep.subr.mxu0 0.0
    %766 = vmatpush1.msra.mxu0 %v39
    %767 = vmatprep.subr.mxu0 0.0
    %768 = vmatpush1.msra.mxu0 %v40
    %769 = vmatprep.subr.mxu0 0.0
    %770 = vmatpush1.msra.mxu0 %v41
    %771 = vmatprep.subr.mxu0 0.0
    %772 = vmatpush1.msra.mxu0 0.0
    %773 = vmatprep.subr.mxu0 0.0
    %774 = vmatpush1.msra.mxu0 0.0
    %775 = vmatprep.subr.mxu0 0.0
    %776 = vmatpush1.msra.mxu0 0.0
    %777 = vmatprep.subr.mxu0 0.0
    %778 = vmatpush1.msra.mxu0 0.0
    %779 = vmatprep.subr.mxu0 0.0
    %780 = vmatpush1.msra.mxu0 0.0
    %781 = vmatprep.subr.mxu0 0.0
    %782 = vmatpush1.msra.mxu0 0.0
    %783 = vmatprep.subr.mxu0 0.0
    %784 = vmatpush1.msra.mxu0 0.0
    %785 = vmatprep.subr.mxu0 0.0
    %786 = vmatpush1.msra.mxu0 0.0
    %787 = vmatprep.subr.mxu0 0.0
    %788 = vmatpush1.msra.mxu0 0.0
    %789 = vmatprep.subr.mxu0 0.0
    %790 = vmatpush1.msra.mxu0 0.0
    %791 = vmatprep.subr.mxu0 0.0
    %792 = vmatpush1.msra.mxu0 0.0
    %793 = vmatprep.subr.mxu0 0.0
    %794 = vmatpush1.msra.mxu0 0.0
    %795 = vmatprep.subr.mxu0 0.0
    %796 = vmatpush1.msra.mxu0 0.0
    %797 = vmatprep.subr.mxu0 0.0
    %798 = vmatpush1.msra.mxu0 0.0
    %799 = vmatprep.subr.mxu0 0.0
    %800 = vmatpush1.msra.mxu0 0.0
    %801 = vmatprep.subr.mxu0 0.0
    %802 = vmatpush1.msra.mxu0 0.0
    %803 = vmatprep.subr.mxu0 0.0
    %804 = vmatpush1.msra.mxu0 0.0
    %805 = vmatprep.subr.mxu0 0.0
    %806 = vmatpush1.msra.mxu0 0.0
    %807 = vmatprep.subr.mxu0 0.0
    %808 = vmatpush1.msra.mxu0 0.0
    %809 = vmatprep.subr.mxu0 0.0
    %810 = vmatpush1.msra.mxu0 0.0
    %811 = vmatprep.subr.mxu0 0.0
    %812 = vmatpush1.msra.mxu0 0.0
    %813 = vmatprep.subr.mxu0 0.0
    %814 = vmatpush1.msra.mxu0 0.0
    %815 = vmatprep.subr.mxu0 0.0
    %816 = vmatpush1.msra.mxu0 0.0
    %817 = vmatprep.subr.mxu0 0.0
    %818 = vmatpush1.msra.mxu0 0.0
    %819 = vmatprep.subr.mxu0 0.0
    %820 = vmatpush1.msra.mxu0 0.0
    %821 = vmatprep.subr.mxu0 0.0
    %822 = vmatpush1.msra.mxu0 0.0
    %823 = vmatprep.subr.mxu0 0.0
    %824 = vmatpush1.msra.mxu0 0.0
    %825 = vmatprep.subr.mxu0 0.0
    %826 = vmatpush1.msra.mxu0 0.0
    %827 = vmatprep.mubr.f32.mxu0 0.0
    %828 = vmatmul.mubr.f32.gmra.mrb[0].mxu0 %v761
    %v829 = vpop.f32.mrb[0].mxu0
    %v830 = vadd.f32 0.0, %v829
    %v831 = vpop.f32.mrb[0].mxu0
    %832 = vdwg.mxu0
    %v833 = vadd.f32 %v169, %v830
    %v834 = vmul.f32 %v833, %v26
    %v835 = vtanh.pop %v834
    %v836 = vmul.f32 %v835, %v26
    %v837 = vadd.f32 %v836, %v27
    %v838 = vmul.f32 %v837, %v751
    %840 = vrot.lane.b32.xlu0 %v837, 32
    %v841 = vpop.permute.xlu0 %840
    %v843 = vmul.f32 %v837, %v841
    %845 = vrot.lane.b32.xlu0 %v843, 32
    %v846 = vpop.permute.xlu0 %845
    %v848 = vadd.f32 %v838, %v846
    %v849 = vtanh.pop %v848
    %851 = vrot.lane.b32.xlu0 %v849, 32
    %v852 = vpop.permute.xlu0 %851
    %v854 = vmul.f32 %v837, %v852
    %856 = vrot.lane.b32.xlu0 %v854, 64
    %v857 = vpop.permute.xlu0 %856
    %v858 = vsel %vm177, %v857, 0
    %860 = vmatprep.subr.mxu0 0.0
    %861 = vmatpush1.msra.mxu0 %v38
    %862 = vmatprep.subr.mxu0 0.0
    %863 = vmatpush1.msra.mxu0 %v39
    %864 = vmatprep.subr.mxu0 0.0
    %865 = vmatpush1.msra.mxu0 %v40
    %866 = vmatprep.subr.mxu0 0.0
    %867 = vmatpush1.msra.mxu0 %v41
    %868 = vmatprep.subr.mxu0 0.0
    %869 = vmatpush1.msra.mxu0 0.0
    %870 = vmatprep.subr.mxu0 0.0
    %871 = vmatpush1.msra.mxu0 0.0
    %872 = vmatprep.subr.mxu0 0.0
    %873 = vmatpush1.msra.mxu0 0.0
    %874 = vmatprep.subr.mxu0 0.0
    %875 = vmatpush1.msra.mxu0 0.0
    %876 = vmatprep.subr.mxu0 0.0
    %877 = vmatpush1.msra.mxu0 0.0
    %878 = vmatprep.subr.mxu0 0.0
    %879 = vmatpush1.msra.mxu0 0.0
    %880 = vmatprep.subr.mxu0 0.0
    %881 = vmatpush1.msra.mxu0 0.0
    %882 = vmatprep.subr.mxu0 0.0
    %883 = vmatpush1.msra.mxu0 0.0
    %884 = vmatprep.subr.mxu0 0.0
    %885 = vmatpush1.msra.mxu0 0.0
    %886 = vmatprep.subr.mxu0 0.0
    %887 = vmatpush1.msra.mxu0 0.0
    %888 = vmatprep.subr.mxu0 0.0
    %889 = vmatpush1.msra.mxu0 0.0
    %890 = vmatprep.subr.mxu0 0.0
    %891 = vmatpush1.msra.mxu0 0.0
    %892 = vmatprep.subr.mxu0 0.0
    %893 = vmatpush1.msra.mxu0 0.0
    %894 = vmatprep.subr.mxu0 0.0
    %895 = vmatpush1.msra.mxu0 0.0
    %896 = vmatprep.subr.mxu0 0.0
    %897 = vmatpush1.msra.mxu0 0.0
    %898 = vmatprep.subr.mxu0 0.0
    %899 = vmatpush1.msra.mxu0 0.0
    %900 = vmatprep.subr.mxu0 0.0
    %901 = vmatpush1.msra.mxu0 0.0
    %902 = vmatprep.subr.mxu0 0.0
    %903 = vmatpush1.msra.mxu0 0.0
    %904 = vmatprep.subr.mxu0 0.0
    %905 = vmatpush1.msra.mxu0 0.0
    %906 = vmatprep.subr.mxu0 0.0
    %907 = vmatpush1.msra.mxu0 0.0
    %908 = vmatprep.subr.mxu0 0.0
    %909 = vmatpush1.msra.mxu0 0.0
    %910 = vmatprep.subr.mxu0 0.0
    %911 = vmatpush1.msra.mxu0 0.0
    %912 = vmatprep.subr.mxu0 0.0
    %913 = vmatpush1.msra.mxu0 0.0
    %914 = vmatprep.subr.mxu0 0.0
    %915 = vmatpush1.msra.mxu0 0.0
    %916 = vmatprep.subr.mxu0 0.0
    %917 = vmatpush1.msra.mxu0 0.0
    %918 = vmatprep.subr.mxu0 0.0
    %919 = vmatpush1.msra.mxu0 0.0
    %920 = vmatprep.subr.mxu0 0.0
    %921 = vmatpush1.msra.mxu0 0.0
    %922 = vmatprep.subr.mxu0 0.0
    %923 = vmatpush1.msra.mxu0 0.0
    %924 = vmatprep.mubr.f32.mxu0 0.0
    %925 = vmatmul.mubr.f32.gmra.mrb[0].mxu0 %v858
    %v926 = vpop.f32.mrb[0].mxu0
    %v927 = vadd.f32 0.0, %v926
    %v928 = vpop.f32.mrb[0].mxu0
    %929 = vdwg.mxu0
    %v930 = vadd.f32 %v174, %v927
    %v931 = vmul.f32 %v930, %v26
    %v932 = vtanh.pop %v931
    %v933 = vmul.f32 %v932, %v26
    %v934 = vadd.f32 %v933, %v27
    %v935 = vmul.f32 %v934, %v848
    %937 = vrot.lane.b32.xlu0 %v934, 32
    %v938 = vpop.permute.xlu0 %937
    %v940 = vmul.f32 %v934, %v938
    %942 = vrot.lane.b32.xlu0 %v940, 32
    %v943 = vpop.permute.xlu0 %942
    %v945 = vadd.f32 %v935, %v943
    %v946 = vtanh.pop %v945
    %948 = vrot.lane.b32.xlu0 %v946, 32
    %v949 = vpop.permute.xlu0 %948
    %v951 = vmul.f32 %v934, %v949
    %v952 = vld [vmem:[#allocation2 + $0x38] sm:$0xff]
    %v953 = vld [vmem:[#allocation2 + $0x40] sm:$0xff]
    %v954 = vld [vmem:[#allocation2 + $0x48] sm:$0xff]
    %v955 = vld [vmem:[#allocation2 + $0x50] sm:$0xff]
    %v956 = vld [vmem:[#allocation2 + $0x58] sm:$0xff]
    %v957 = vld [vmem:[#allocation2 + $0x60] sm:$0xff]
    %v958 = vld [vmem:[#allocation2 + $0x68] sm:$0xff]
    %v959 = vld [vmem:[#allocation2 + $0x70] sm:$0xff]
    %v960 = vld [vmem:[#allocation2 + $0x88] sm:$0x1]
    %v961 = vlaneseq
    %v962 = vshrl.u32 %v961, 7
    %v963 = vsub.s32 0, %v962
    %v964 = vrot.slane %v960, %v963
    %966 = vrot.lane.b32.xlu0 %v951, 64
    %v967 = vpop.permute.xlu0 %966
    %v968 = vsel %vm177, %v967, 0
    %970 = vmatprep.subr.mxu0 0.0
    %971 = vmatpush1.msra.mxu0 %v952
    %972 = vmatprep.subr.mxu0 0.0
    %973 = vmatpush1.msra.mxu0 %v953
    %974 = vmatprep.subr.mxu0 0.0
    %975 = vmatpush1.msra.mxu0 %v954
    %976 = vmatprep.subr.mxu0 0.0
    %977 = vmatpush1.msra.mxu0 %v955
    %978 = vmatprep.subr.mxu0 0.0
    %979 = vmatpush1.msra.mxu0 0.0
    %980 = vmatprep.subr.mxu0 0.0
    %981 = vmatpush1.msra.mxu0 0.0
    %982 = vmatprep.subr.mxu0 0.0
    %983 = vmatpush1.msra.mxu0 0.0
    %984 = vmatprep.subr.mxu0 0.0
    %985 = vmatpush1.msra.mxu0 0.0
    %986 = vmatprep.subr.mxu0 0.0
    %987 = vmatpush1.msra.mxu0 0.0
    %988 = vmatprep.subr.mxu0 0.0
    %989 = vmatpush1.msra.mxu0 0.0
    %990 = vmatprep.subr.mxu0 0.0
    %991 = vmatpush1.msra.mxu0 0.0
    %992 = vmatprep.subr.mxu0 0.0
    %993 = vmatpush1.msra.mxu0 0.0
    %994 = vmatprep.subr.mxu0 0.0
    %995 = vmatpush1.msra.mxu0 0.0
    %996 = vmatprep.subr.mxu0 0.0
    %997 = vmatpush1.msra.mxu0 0.0
    %998 = vmatprep.subr.mxu0 0.0
    %999 = vmatpush1.msra.mxu0 0.0
    %1000 = vmatprep.subr.mxu0 0.0
    %1001 = vmatpush1.msra.mxu0 0.0
    %1002 = vmatprep.subr.mxu0 0.0
    %1003 = vmatpush1.msra.mxu0 0.0
    %1004 = vmatprep.subr.mxu0 0.0
    %1005 = vmatpush1.msra.mxu0 0.0
    %1006 = vmatprep.subr.mxu0 0.0
    %1007 = vmatpush1.msra.mxu0 0.0
    %1008 = vmatprep.subr.mxu0 0.0
    %1009 = vmatpush1.msra.mxu0 0.0
    %1010 = vmatprep.subr.mxu0 0.0
    %1011 = vmatpush1.msra.mxu0 0.0
    %1012 = vmatprep.subr.mxu0 0.0
    %1013 = vmatpush1.msra.mxu0 0.0
    %1014 = vmatprep.subr.mxu0 0.0
    %1015 = vmatpush1.msra.mxu0 0.0
    %1016 = vmatprep.subr.mxu0 0.0
    %1017 = vmatpush1.msra.mxu0 0.0
    %1018 = vmatprep.subr.mxu0 0.0
    %1019 = vmatpush1.msra.mxu0 0.0
    %1020 = vmatprep.subr.mxu0 0.0
    %1021 = vmatpush1.msra.mxu0 0.0
    %1022 = vmatprep.subr.mxu0 0.0
    %1023 = vmatpush1.msra.mxu0 0.0
    %1024 = vmatprep.subr.mxu0 0.0
    %1025 = vmatpush1.msra.mxu0 0.0
    %1026 = vmatprep.subr.mxu0 0.0
    %1027 = vmatpush1.msra.mxu0 0.0
    %1028 = vmatprep.subr.mxu0 0.0
    %1029 = vmatpush1.msra.mxu0 0.0
    %1030 = vmatprep.subr.mxu0 0.0
    %1031 = vmatpush1.msra.mxu0 0.0
    %1032 = vmatprep.subr.mxu0 0.0
    %1033 = vmatpush1.msra.mxu0 0.0
    %1034 = vmatprep.mubr.f32.mxu0 0.0
    %1035 = vmatmul.mubr.f32.gmra.mrb[0].mxu0 %v276
    %v1036 = vpop.f32.mrb[0].mxu0
    %v1037 = vadd.f32 %v964, %v1036
    %v1038 = vpop.f32.mrb[0].mxu0
    %1039 = vmatprep.mubr.f32.mxu0 0.0
    %1040 = vmatmul.mubr.f32.gmra.mrb[0].mxu0 %v373
    %v1041 = vpop.f32.mrb[0].mxu0
    %v1042 = vadd.f32 %v964, %v1041
    %v1043 = vpop.f32.mrb[0].mxu0
    %1044 = vmatprep.mubr.f32.mxu0 0.0
    %1045 = vmatmul.mubr.f32.gmra.mrb[0].mxu0 %v470
    %v1046 = vpop.f32.mrb[0].mxu0
    %v1047 = vadd.f32 %v964, %v1046
    %v1048 = vpop.f32.mrb[0].mxu0
    %1049 = vmatprep.mubr.f32.mxu0 0.0
    %1050 = vmatmul.mubr.f32.gmra.mrb[0].mxu0 %v567
    %v1051 = vpop.f32.mrb[0].mxu0
    %v1052 = vadd.f32 %v964, %v1051
    %v1053 = vpop.f32.mrb[0].mxu0
    %1054 = vmatprep.mubr.f32.mxu0 0.0
    %1055 = vmatmul.mubr.f32.gmra.mrb[0].mxu0 %v664
    %v1056 = vpop.f32.mrb[0].mxu0
    %v1057 = vadd.f32 %v964, %v1056
    %v1058 = vpop.f32.mrb[0].mxu0
    %1059 = vmatprep.mubr.f32.mxu0 0.0
    %1060 = vmatmul.mubr.f32.gmra.mrb[0].mxu0 %v761
    %v1061 = vpop.f32.mrb[0].mxu0
    %v1062 = vadd.f32 %v964, %v1061
    %v1063 = vpop.f32.mrb[0].mxu0
    %1064 = vmatprep.mubr.f32.mxu0 0.0
    %1065 = vmatmul.mubr.f32.gmra.mrb[0].mxu0 %v858
    %v1066 = vpop.f32.mrb[0].mxu0
    %v1067 = vadd.f32 %v964, %v1066
    %v1068 = vpop.f32.mrb[0].mxu0
    %1069 = vmatprep.mubr.f32.mxu0 0.0
    %1070 = vmatmul.mubr.f32.gmra.mrb[0].mxu0 %v968
    %v1071 = vpop.f32.mrb[0].mxu0
    %v1072 = vadd.f32 %v964, %v1071
    %v1073 = vpop.f32.mrb[0].mxu0
    %1074 = vdwg.mxu0
    %1075 = vmatprep.subr.mxu0 0.0
    %1076 = vmatpush1.msra.mxu0 %v956
    %1077 = vmatprep.subr.mxu0 0.0
    %1078 = vmatpush1.msra.mxu0 %v957
    %1079 = vmatprep.subr.mxu0 0.0
    %1080 = vmatpush1.msra.mxu0 %v958
    %1081 = vmatprep.subr.mxu0 0.0
    %1082 = vmatpush1.msra.mxu0 %v959
    %1083 = vmatprep.subr.mxu0 0.0
    %1084 = vmatpush1.msra.mxu0 0.0
    %1085 = vmatprep.subr.mxu0 0.0
    %1086 = vmatpush1.msra.mxu0 0.0
    %1087 = vmatprep.subr.mxu0 0.0
    %1088 = vmatpush1.msra.mxu0 0.0
    %1089 = vmatprep.subr.mxu0 0.0
    %1090 = vmatpush1.msra.mxu0 0.0
    %1091 = vmatprep.subr.mxu0 0.0
    %1092 = vmatpush1.msra.mxu0 0.0
    %1093 = vmatprep.subr.mxu0 0.0
    %1094 = vmatpush1.msra.mxu0 0.0
    %1095 = vmatprep.subr.mxu0 0.0
    %1096 = vmatpush1.msra.mxu0 0.0
    %1097 = vmatprep.subr.mxu0 0.0
    %1098 = vmatpush1.msra.mxu0 0.0
    %1099 = vmatprep.subr.mxu0 0.0
    %1100 = vmatpush1.msra.mxu0 0.0
    %1101 = vmatprep.subr.mxu0 0.0
    %1102 = vmatpush1.msra.mxu0 0.0
    %1103 = vmatprep.subr.mxu0 0.0
    %1104 = vmatpush1.msra.mxu0 0.0
    %1105 = vmatprep.subr.mxu0 0.0
    %1106 = vmatpush1.msra.mxu0 0.0
    %1107 = vmatprep.subr.mxu0 0.0
    %1108 = vmatpush1.msra.mxu0 0.0
    %1109 = vmatprep.subr.mxu0 0.0
    %1110 = vmatpush1.msra.mxu0 0.0
    %1111 = vmatprep.subr.mxu0 0.0
    %1112 = vmatpush1.msra.mxu0 0.0
    %1113 = vmatprep.subr.mxu0 0.0
    %1114 = vmatpush1.msra.mxu0 0.0
    %1115 = vmatprep.subr.mxu0 0.0
    %1116 = vmatpush1.msra.mxu0 0.0
    %1117 = vmatprep.subr.mxu0 0.0
    %1118 = vmatpush1.msra.mxu0 0.0
    %1119 = vmatprep.subr.mxu0 0.0
    %1120 = vmatpush1.msra.mxu0 0.0
    %1121 = vmatprep.subr.mxu0 0.0
    %1122 = vmatpush1.msra.mxu0 0.0
    %1123 = vmatprep.subr.mxu0 0.0
    %1124 = vmatpush1.msra.mxu0 0.0
    %1125 = vmatprep.subr.mxu0 0.0
    %1126 = vmatpush1.msra.mxu0 0.0
    %1127 = vmatprep.subr.mxu0 0.0
    %1128 = vmatpush1.msra.mxu0 0.0
    %1129 = vmatprep.subr.mxu0 0.0
    %1130 = vmatpush1.msra.mxu0 0.0
    %1131 = vmatprep.subr.mxu0 0.0
    %1132 = vmatpush1.msra.mxu0 0.0
    %1133 = vmatprep.subr.mxu0 0.0
    %1134 = vmatpush1.msra.mxu0 0.0
    %1135 = vmatprep.subr.mxu0 0.0
    %1136 = vmatpush1.msra.mxu0 0.0
    %1137 = vmatprep.subr.mxu0 0.0
    %1138 = vmatpush1.msra.mxu0 0.0
    %1139 = vmatprep.mubr.f32.mxu0 0.0
    %1140 = vmatmul.mubr.f32.gmra.mrb[0].mxu0 %v179
    %v1141 = vpop.f32.mrb[0].mxu0
    %v1142 = vadd.f32 0.0, %v1141
    %v1143 = vpop.f32.mrb[0].mxu0
    %1144 = vdwg.mxu0
    %v1145 = vadd.f32 %v1037, %v1142
    %v1146 = vmul.f32 %v1145, %v26
    %v1147 = vtanh.pop %v1146
    %v1148 = vmul.f32 %v1147, %v26
    %v1149 = vadd.f32 %v1148, %v27
    %v1150 = vmul.f32 %v1149, 0.0
    %1152 = vrot.lane.b32.xlu0 %v1149, 32
    %v1153 = vpop.permute.xlu0 %1152
    %v1155 = vmul.f32 %v1149, %v1153
    %1157 = vrot.lane.b32.xlu0 %v1155, 32
    %v1158 = vpop.permute.xlu0 %1157
    %v1160 = vadd.f32 %v1150, %v1158
    %v1161 = vtanh.pop %v1160
    %1163 = vrot.lane.b32.xlu0 %v1161, 32
    %v1164 = vpop.permute.xlu0 %1163
    %v1166 = vmul.f32 %v1149, %v1164
    %1168 = vrot.lane.b32.xlu0 %v1166, 64
    %v1169 = vpop.permute.xlu0 %1168
    %v1170 = vsel %vm177, %v1169, 0
    %1172 = vmatprep.subr.mxu0 0.0
    %1173 = vmatpush1.msra.mxu0 %v956
    %1174 = vmatprep.subr.mxu0 0.0
    %1175 = vmatpush1.msra.mxu0 %v957
    %1176 = vmatprep.subr.mxu0 0.0
    %1177 = vmatpush1.msra.mxu0 %v958
    %1178 = vmatprep.subr.mxu0 0.0
    %1179 = vmatpush1.msra.mxu0 %v959
    %1180 = vmatprep.subr.mxu0 0.0
    %1181 = vmatpush1.msra.mxu0 0.0
    %1182 = vmatprep.subr.mxu0 0.0
    %1183 = vmatpush1.msra.mxu0 0.0
    %1184 = vmatprep.subr.mxu0 0.0
    %1185 = vmatpush1.msra.mxu0 0.0
    %1186 = vmatprep.subr.mxu0 0.0
    %1187 = vmatpush1.msra.mxu0 0.0
    %1188 = vmatprep.subr.mxu0 0.0
    %1189 = vmatpush1.msra.mxu0 0.0
    %1190 = vmatprep.subr.mxu0 0.0
    %1191 = vmatpush1.msra.mxu0 0.0
    %1192 = vmatprep.subr.mxu0 0.0
    %1193 = vmatpush1.msra.mxu0 0.0
    %1194 = vmatprep.subr.mxu0 0.0
    %1195 = vmatpush1.msra.mxu0 0.0
    %1196 = vmatprep.subr.mxu0 0.0
    %1197 = vmatpush1.msra.mxu0 0.0
    %1198 = vmatprep.subr.mxu0 0.0
    %1199 = vmatpush1.msra.mxu0 0.0
    %1200 = vmatprep.subr.mxu0 0.0
    %1201 = vmatpush1.msra.mxu0 0.0
    %1202 = vmatprep.subr.mxu0 0.0
    %1203 = vmatpush1.msra.mxu0 0.0
    %1204 = vmatprep.subr.mxu0 0.0
    %1205 = vmatpush1.msra.mxu0 0.0
    %1206 = vmatprep.subr.mxu0 0.0
    %1207 = vmatpush1.msra.mxu0 0.0
    %1208 = vmatprep.subr.mxu0 0.0
    %1209 = vmatpush1.msra.mxu0 0.0
    %1210 = vmatprep.subr.mxu0 0.0
    %1211 = vmatpush1.msra.mxu0 0.0
    %1212 = vmatprep.subr.mxu0 0.0
    %1213 = vmatpush1.msra.mxu0 0.0
    %1214 = vmatprep.subr.mxu0 0.0
    %1215 = vmatpush1.msra.mxu0 0.0
    %1216 = vmatprep.subr.mxu0 0.0
    %1217 = vmatpush1.msra.mxu0 0.0
    %1218 = vmatprep.subr.mxu0 0.0
    %1219 = vmatpush1.msra.mxu0 0.0
    %1220 = vmatprep.subr.mxu0 0.0
    %1221 = vmatpush1.msra.mxu0 0.0
    %1222 = vmatprep.subr.mxu0 0.0
    %1223 = vmatpush1.msra.mxu0 0.0
    %1224 = vmatprep.subr.mxu0 0.0
    %1225 = vmatpush1.msra.mxu0 0.0
    %1226 = vmatprep.subr.mxu0 0.0
    %1227 = vmatpush1.msra.mxu0 0.0
    %1228 = vmatprep.subr.mxu0 0.0
    %1229 = vmatpush1.msra.mxu0 0.0
    %1230 = vmatprep.subr.mxu0 0.0
    %1231 = vmatpush1.msra.mxu0 0.0
    %1232 = vmatprep.subr.mxu0 0.0
    %1233 = vmatpush1.msra.mxu0 0.0
    %1234 = vmatprep.subr.mxu0 0.0
    %1235 = vmatpush1.msra.mxu0 0.0
    %1236 = vmatprep.mubr.f32.mxu0 0.0
    %1237 = vmatmul.mubr.f32.gmra.mrb[0].mxu0 %v1170
    %v1238 = vpop.f32.mrb[0].mxu0
    %v1239 = vadd.f32 0.0, %v1238
    %v1240 = vpop.f32.mrb[0].mxu0
    %1241 = vdwg.mxu0
    %v1242 = vadd.f32 %v1042, %v1239
    %v1243 = vmul.f32 %v1242, %v26
    %v1244 = vtanh.pop %v1243
    %v1245 = vmul.f32 %v1244, %v26
    %v1246 = vadd.f32 %v1245, %v27
    %v1247 = vmul.f32 %v1246, %v1160
    %1249 = vrot.lane.b32.xlu0 %v1246, 32
    %v1250 = vpop.permute.xlu0 %1249
    %v1252 = vmul.f32 %v1246, %v1250
    %1254 = vrot.lane.b32.xlu0 %v1252, 32
    %v1255 = vpop.permute.xlu0 %1254
    %v1257 = vadd.f32 %v1247, %v1255
    %v1258 = vtanh.pop %v1257
    %1260 = vrot.lane.b32.xlu0 %v1258, 32
    %v1261 = vpop.permute.xlu0 %1260
    %v1263 = vmul.f32 %v1246, %v1261
    %1265 = vrot.lane.b32.xlu0 %v1263, 64
    %v1266 = vpop.permute.xlu0 %1265
    %v1267 = vsel %vm177, %v1266, 0
    %1269 = vmatprep.subr.mxu0 0.0
    %1270 = vmatpush1.msra.mxu0 %v956
    %1271 = vmatprep.subr.mxu0 0.0
    %1272 = vmatpush1.msra.mxu0 %v957
    %1273 = vmatprep.subr.mxu0 0.0
    %1274 = vmatpush1.msra.mxu0 %v958
    %1275 = vmatprep.subr.mxu0 0.0
    %1276 = vmatpush1.msra.mxu0 %v959
    %1277 = vmatprep.subr.mxu0 0.0
    %1278 = vmatpush1.msra.mxu0 0.0
    %1279 = vmatprep.subr.mxu0 0.0
    %1280 = vmatpush1.msra.mxu0 0.0
    %1281 = vmatprep.subr.mxu0 0.0
    %1282 = vmatpush1.msra.mxu0 0.0
    %1283 = vmatprep.subr.mxu0 0.0
    %1284 = vmatpush1.msra.mxu0 0.0
    %1285 = vmatprep.subr.mxu0 0.0
    %1286 = vmatpush1.msra.mxu0 0.0
    %1287 = vmatprep.subr.mxu0 0.0
    %1288 = vmatpush1.msra.mxu0 0.0
    %1289 = vmatprep.subr.mxu0 0.0
    %1290 = vmatpush1.msra.mxu0 0.0
    %1291 = vmatprep.subr.mxu0 0.0
    %1292 = vmatpush1.msra.mxu0 0.0
    %1293 = vmatprep.subr.mxu0 0.0
    %1294 = vmatpush1.msra.mxu0 0.0
    %1295 = vmatprep.subr.mxu0 0.0
    %1296 = vmatpush1.msra.mxu0 0.0
    %1297 = vmatprep.subr.mxu0 0.0
    %1298 = vmatpush1.msra.mxu0 0.0
    %1299 = vmatprep.subr.mxu0 0.0
    %1300 = vmatpush1.msra.mxu0 0.0
    %1301 = vmatprep.subr.mxu0 0.0
    %1302 = vmatpush1.msra.mxu0 0.0
    %1303 = vmatprep.subr.mxu0 0.0
    %1304 = vmatpush1.msra.mxu0 0.0
    %1305 = vmatprep.subr.mxu0 0.0
    %1306 = vmatpush1.msra.mxu0 0.0
    %1307 = vmatprep.subr.mxu0 0.0
    %1308 = vmatpush1.msra.mxu0 0.0
    %1309 = vmatprep.subr.mxu0 0.0
    %1310 = vmatpush1.msra.mxu0 0.0
    %1311 = vmatprep.subr.mxu0 0.0
    %1312 = vmatpush1.msra.mxu0 0.0
    %1313 = vmatprep.subr.mxu0 0.0
    %1314 = vmatpush1.msra.mxu0 0.0
    %1315 = vmatprep.subr.mxu0 0.0
    %1316 = vmatpush1.msra.mxu0 0.0
    %1317 = vmatprep.subr.mxu0 0.0
    %1318 = vmatpush1.msra.mxu0 0.0
    %1319 = vmatprep.subr.mxu0 0.0
    %1320 = vmatpush1.msra.mxu0 0.0
    %1321 = vmatprep.subr.mxu0 0.0
    %1322 = vmatpush1.msra.mxu0 0.0
    %1323 = vmatprep.subr.mxu0 0.0
    %1324 = vmatpush1.msra.mxu0 0.0
    %1325 = vmatprep.subr.mxu0 0.0
    %1326 = vmatpush1.msra.mxu0 0.0
    %1327 = vmatprep.subr.mxu0 0.0
    %1328 = vmatpush1.msra.mxu0 0.0
    %1329 = vmatprep.subr.mxu0 0.0
    %1330 = vmatpush1.msra.mxu0 0.0
    %1331 = vmatprep.subr.mxu0 0.0
    %1332 = vmatpush1.msra.mxu0 0.0
    %1333 = vmatprep.mubr.f32.mxu0 0.0
    %1334 = vmatmul.mubr.f32.gmra.mrb[0].mxu0 %v1267
    %v1335 = vpop.f32.mrb[0].mxu0
    %v1336 = vadd.f32 0.0, %v1335
    %v1337 = vpop.f32.mrb[0].mxu0
    %1338 = vdwg.mxu0
    %v1339 = vadd.f32 %v1047, %v1336
    %v1340 = vmul.f32 %v1339, %v26
    %v1341 = vtanh.pop %v1340
    %v1342 = vmul.f32 %v1341, %v26
    %v1343 = vadd.f32 %v1342, %v27
    %v1344 = vmul.f32 %v1343, %v1257
    %1346 = vrot.lane.b32.xlu0 %v1343, 32
    %v1347 = vpop.permute.xlu0 %1346
    %v1349 = vmul.f32 %v1343, %v1347
    %1351 = vrot.lane.b32.xlu0 %v1349, 32
    %v1352 = vpop.permute.xlu0 %1351
    %v1354 = vadd.f32 %v1344, %v1352
    %v1355 = vtanh.pop %v1354
    %1357 = vrot.lane.b32.xlu0 %v1355, 32
    %v1358 = vpop.permute.xlu0 %1357
    %v1360 = vmul.f32 %v1343, %v1358
    %1362 = vrot.lane.b32.xlu0 %v1360, 64
    %v1363 = vpop.permute.xlu0 %1362
    %v1364 = vsel %vm177, %v1363, 0
    %1366 = vmatprep.subr.mxu0 0.0
    %1367 = vmatpush1.msra.mxu0 %v956
    %1368 = vmatprep.subr.mxu0 0.0
    %1369 = vmatpush1.msra.mxu0 %v957
    %1370 = vmatprep.subr.mxu0 0.0
    %1371 = vmatpush1.msra.mxu0 %v958
    %1372 = vmatprep.subr.mxu0 0.0
    %1373 = vmatpush1.msra.mxu0 %v959
    %1374 = vmatprep.subr.mxu0 0.0
    %1375 = vmatpush1.msra.mxu0 0.0
    %1376 = vmatprep.subr.mxu0 0.0
    %1377 = vmatpush1.msra.mxu0 0.0
    %1378 = vmatprep.subr.mxu0 0.0
    %1379 = vmatpush1.msra.mxu0 0.0
    %1380 = vmatprep.subr.mxu0 0.0
    %1381 = vmatpush1.msra.mxu0 0.0
    %1382 = vmatprep.subr.mxu0 0.0
    %1383 = vmatpush1.msra.mxu0 0.0
    %1384 = vmatprep.subr.mxu0 0.0
    %1385 = vmatpush1.msra.mxu0 0.0
    %1386 = vmatprep.subr.mxu0 0.0
    %1387 = vmatpush1.msra.mxu0 0.0
    %1388 = vmatprep.subr.mxu0 0.0
    %1389 = vmatpush1.msra.mxu0 0.0
    %1390 = vmatprep.subr.mxu0 0.0
    %1391 = vmatpush1.msra.mxu0 0.0
    %1392 = vmatprep.subr.mxu0 0.0
    %1393 = vmatpush1.msra.mxu0 0.0
    %1394 = vmatprep.subr.mxu0 0.0
    %1395 = vmatpush1.msra.mxu0 0.0
    %1396 = vmatprep.subr.mxu0 0.0
    %1397 = vmatpush1.msra.mxu0 0.0
    %1398 = vmatprep.subr.mxu0 0.0
    %1399 = vmatpush1.msra.mxu0 0.0
    %1400 = vmatprep.subr.mxu0 0.0
    %1401 = vmatpush1.msra.mxu0 0.0
    %1402 = vmatprep.subr.mxu0 0.0
    %1403 = vmatpush1.msra.mxu0 0.0
    %1404 = vmatprep.subr.mxu0 0.0
    %1405 = vmatpush1.msra.mxu0 0.0
    %1406 = vmatprep.subr.mxu0 0.0
    %1407 = vmatpush1.msra.mxu0 0.0
    %1408 = vmatprep.subr.mxu0 0.0
    %1409 = vmatpush1.msra.mxu0 0.0
    %1410 = vmatprep.subr.mxu0 0.0
    %1411 = vmatpush1.msra.mxu0 0.0
    %1412 = vmatprep.subr.mxu0 0.0
    %1413 = vmatpush1.msra.mxu0 0.0
    %1414 = vmatprep.subr.mxu0 0.0
    %1415 = vmatpush1.msra.mxu0 0.0
    %1416 = vmatprep.subr.mxu0 0.0
    %1417 = vmatpush1.msra.mxu0 0.0
    %1418 = vmatprep.subr.mxu0 0.0
    %1419 = vmatpush1.msra.mxu0 0.0
    %1420 = vmatprep.subr.mxu0 0.0
    %1421 = vmatpush1.msra.mxu0 0.0
    %1422 = vmatprep.subr.mxu0 0.0
    %1423 = vmatpush1.msra.mxu0 0.0
    %1424 = vmatprep.subr.mxu0 0.0
    %1425 = vmatpush1.msra.mxu0 0.0
    %1426 = vmatprep.subr.mxu0 0.0
    %1427 = vmatpush1.msra.mxu0 0.0
    %1428 = vmatprep.subr.mxu0 0.0
    %1429 = vmatpush1.msra.mxu0 0.0
    %1430 = vmatprep.mubr.f32.mxu0 0.0
    %1431 = vmatmul.mubr.f32.gmra.mrb[0].mxu0 %v1364
    %v1432 = vpop.f32.mrb[0].mxu0
    %v1433 = vadd.f32 0.0, %v1432
    %v1434 = vpop.f32.mrb[0].mxu0
    %1435 = vdwg.mxu0
    %v1436 = vadd.f32 %v1052, %v1433
    %v1437 = vmul.f32 %v1436, %v26
    %v1438 = vtanh.pop %v1437
    %v1439 = vmul.f32 %v1438, %v26
    %v1440 = vadd.f32 %v1439, %v27
    %v1441 = vmul.f32 %v1440, %v1354
    %1443 = vrot.lane.b32.xlu0 %v1440, 32
    %v1444 = vpop.permute.xlu0 %1443
    %v1446 = vmul.f32 %v1440, %v1444
    %1448 = vrot.lane.b32.xlu0 %v1446, 32
    %v1449 = vpop.permute.xlu0 %1448
    %v1451 = vadd.f32 %v1441, %v1449
    %v1452 = vtanh.pop %v1451
    %1454 = vrot.lane.b32.xlu0 %v1452, 32
    %v1455 = vpop.permute.xlu0 %1454
    %v1457 = vmul.f32 %v1440, %v1455
    %1459 = vrot.lane.b32.xlu0 %v1457, 64
    %v1460 = vpop.permute.xlu0 %1459
    %v1461 = vsel %vm177, %v1460, 0
    %1463 = vmatprep.subr.mxu0 0.0
    %1464 = vmatpush1.msra.mxu0 %v956
    %1465 = vmatprep.subr.mxu0 0.0
    %1466 = vmatpush1.msra.mxu0 %v957
    %1467 = vmatprep.subr.mxu0 0.0
    %1468 = vmatpush1.msra.mxu0 %v958
    %1469 = vmatprep.subr.mxu0 0.0
    %1470 = vmatpush1.msra.mxu0 %v959
    %1471 = vmatprep.subr.mxu0 0.0
    %1472 = vmatpush1.msra.mxu0 0.0
    %1473 = vmatprep.subr.mxu0 0.0
    %1474 = vmatpush1.msra.mxu0 0.0
    %1475 = vmatprep.subr.mxu0 0.0
    %1476 = vmatpush1.msra.mxu0 0.0
    %1477 = vmatprep.subr.mxu0 0.0
    %1478 = vmatpush1.msra.mxu0 0.0
    %1479 = vmatprep.subr.mxu0 0.0
    %1480 = vmatpush1.msra.mxu0 0.0
    %1481 = vmatprep.subr.mxu0 0.0
    %1482 = vmatpush1.msra.mxu0 0.0
    %1483 = vmatprep.subr.mxu0 0.0
    %1484 = vmatpush1.msra.mxu0 0.0
    %1485 = vmatprep.subr.mxu0 0.0
    %1486 = vmatpush1.msra.mxu0 0.0
    %1487 = vmatprep.subr.mxu0 0.0
    %1488 = vmatpush1.msra.mxu0 0.0
    %1489 = vmatprep.subr.mxu0 0.0
    %1490 = vmatpush1.msra.mxu0 0.0
    %1491 = vmatprep.subr.mxu0 0.0
    %1492 = vmatpush1.msra.mxu0 0.0
    %1493 = vmatprep.subr.mxu0 0.0
    %1494 = vmatpush1.msra.mxu0 0.0
    %1495 = vmatprep.subr.mxu0 0.0
    %1496 = vmatpush1.msra.mxu0 0.0
    %1497 = vmatprep.subr.mxu0 0.0
    %1498 = vmatpush1.msra.mxu0 0.0
    %1499 = vmatprep.subr.mxu0 0.0
    %1500 = vmatpush1.msra.mxu0 0.0
    %1501 = vmatprep.subr.mxu0 0.0
    %1502 = vmatpush1.msra.mxu0 0.0
    %1503 = vmatprep.subr.mxu0 0.0
    %1504 = vmatpush1.msra.mxu0 0.0
    %1505 = vmatprep.subr.mxu0 0.0
    %1506 = vmatpush1.msra.mxu0 0.0
    %1507 = vmatprep.subr.mxu0 0.0
    %1508 = vmatpush1.msra.mxu0 0.0
    %1509 = vmatprep.subr.mxu0 0.0
    %1510 = vmatpush1.msra.mxu0 0.0
    %1511 = vmatprep.subr.mxu0 0.0
    %1512 = vmatpush1.msra.mxu0 0.0
    %1513 = vmatprep.subr.mxu0 0.0
    %1514 = vmatpush1.msra.mxu0 0.0
    %1515 = vmatprep.subr.mxu0 0.0
    %1516 = vmatpush1.msra.mxu0 0.0
    %1517 = vmatprep.subr.mxu0 0.0
    %1518 = vmatpush1.msra.mxu0 0.0
    %1519 = vmatprep.subr.mxu0 0.0
    %1520 = vmatpush1.msra.mxu0 0.0
    %1521 = vmatprep.subr.mxu0 0.0
    %1522 = vmatpush1.msra.mxu0 0.0
    %1523 = vmatprep.subr.mxu0 0.0
    %1524 = vmatpush1.msra.mxu0 0.0
    %1525 = vmatprep.subr.mxu0 0.0
    %1526 = vmatpush1.msra.mxu0 0.0
    %1527 = vmatprep.mubr.f32.mxu0 0.0
    %1528 = vmatmul.mubr.f32.gmra.mrb[0].mxu0 %v1461
    %v1529 = vpop.f32.mrb[0].mxu0
    %v1530 = vadd.f32 0.0, %v1529
    %v1531 = vpop.f32.mrb[0].mxu0
    %1532 = vdwg.mxu0
    %v1533 = vadd.f32 %v1057, %v1530
    %v1534 = vmul.f32 %v1533, %v26
    %v1535 = vtanh.pop %v1534
    %v1536 = vmul.f32 %v1535, %v26
    %v1537 = vadd.f32 %v1536, %v27
    %v1538 = vmul.f32 %v1537, %v1451
    %1540 = vrot.lane.b32.xlu0 %v1537, 32
    %v1541 = vpop.permute.xlu0 %1540
    %v1543 = vmul.f32 %v1537, %v1541
    %1545 = vrot.lane.b32.xlu0 %v1543, 32
    %v1546 = vpop.permute.xlu0 %1545
    %v1548 = vadd.f32 %v1538, %v1546
    %v1549 = vtanh.pop %v1548
    %1551 = vrot.lane.b32.xlu0 %v1549, 32
    %v1552 = vpop.permute.xlu0 %1551
    %v1554 = vmul.f32 %v1537, %v1552
    %1556 = vrot.lane.b32.xlu0 %v1554, 64
    %v1557 = vpop.permute.xlu0 %1556
    %v1558 = vsel %vm177, %v1557, 0
    %1560 = vmatprep.subr.mxu0 0.0
    %1561 = vmatpush1.msra.mxu0 %v956
    %1562 = vmatprep.subr.mxu0 0.0
    %1563 = vmatpush1.msra.mxu0 %v957
    %1564 = vmatprep.subr.mxu0 0.0
    %1565 = vmatpush1.msra.mxu0 %v958
    %1566 = vmatprep.subr.mxu0 0.0
    %1567 = vmatpush1.msra.mxu0 %v959
    %1568 = vmatprep.subr.mxu0 0.0
    %1569 = vmatpush1.msra.mxu0 0.0
    %1570 = vmatprep.subr.mxu0 0.0
    %1571 = vmatpush1.msra.mxu0 0.0
    %1572 = vmatprep.subr.mxu0 0.0
    %1573 = vmatpush1.msra.mxu0 0.0
    %1574 = vmatprep.subr.mxu0 0.0
    %1575 = vmatpush1.msra.mxu0 0.0
    %1576 = vmatprep.subr.mxu0 0.0
    %1577 = vmatpush1.msra.mxu0 0.0
    %1578 = vmatprep.subr.mxu0 0.0
    %1579 = vmatpush1.msra.mxu0 0.0
    %1580 = vmatprep.subr.mxu0 0.0
    %1581 = vmatpush1.msra.mxu0 0.0
    %1582 = vmatprep.subr.mxu0 0.0
    %1583 = vmatpush1.msra.mxu0 0.0
    %1584 = vmatprep.subr.mxu0 0.0
    %1585 = vmatpush1.msra.mxu0 0.0
    %1586 = vmatprep.subr.mxu0 0.0
    %1587 = vmatpush1.msra.mxu0 0.0
    %1588 = vmatprep.subr.mxu0 0.0
    %1589 = vmatpush1.msra.mxu0 0.0
    %1590 = vmatprep.subr.mxu0 0.0
    %1591 = vmatpush1.msra.mxu0 0.0
    %1592 = vmatprep.subr.mxu0 0.0
    %1593 = vmatpush1.msra.mxu0 0.0
    %1594 = vmatprep.subr.mxu0 0.0
    %1595 = vmatpush1.msra.mxu0 0.0
    %1596 = vmatprep.subr.mxu0 0.0
    %1597 = vmatpush1.msra.mxu0 0.0
    %1598 = vmatprep.subr.mxu0 0.0
    %1599 = vmatpush1.msra.mxu0 0.0
    %1600 = vmatprep.subr.mxu0 0.0
    %1601 = vmatpush1.msra.mxu0 0.0
    %1602 = vmatprep.subr.mxu0 0.0
    %1603 = vmatpush1.msra.mxu0 0.0
    %1604 = vmatprep.subr.mxu0 0.0
    %1605 = vmatpush1.msra.mxu0 0.0
    %1606 = vmatprep.subr.mxu0 0.0
    %1607 = vmatpush1.msra.mxu0 0.0
    %1608 = vmatprep.subr.mxu0 0.0
    %1609 = vmatpush1.msra.mxu0 0.0
    %1610 = vmatprep.subr.mxu0 0.0
    %1611 = vmatpush1.msra.mxu0 0.0
    %1612 = vmatprep.subr.mxu0 0.0
    %1613 = vmatpush1.msra.mxu0 0.0
    %1614 = vmatprep.subr.mxu0 0.0
    %1615 = vmatpush1.msra.mxu0 0.0
    %1616 = vmatprep.subr.mxu0 0.0
    %1617 = vmatpush1.msra.mxu0 0.0
    %1618 = vmatprep.subr.mxu0 0.0
    %1619 = vmatpush1.msra.mxu0 0.0
    %1620 = vmatprep.subr.mxu0 0.0
    %1621 = vmatpush1.msra.mxu0 0.0
    %1622 = vmatprep.subr.mxu0 0.0
    %1623 = vmatpush1.msra.mxu0 0.0
    %1624 = vmatprep.mubr.f32.mxu0 0.0
    %1625 = vmatmul.mubr.f32.gmra.mrb[0].mxu0 %v1558
    %v1626 = vpop.f32.mrb[0].mxu0
    %v1627 = vadd.f32 0.0, %v1626
    %v1628 = vpop.f32.mrb[0].mxu0
    %1629 = vdwg.mxu0
    %v1630 = vadd.f32 %v1062, %v1627
    %v1631 = vmul.f32 %v1630, %v26
    %v1632 = vtanh.pop %v1631
    %v1633 = vmul.f32 %v1632, %v26
    %v1634 = vadd.f32 %v1633, %v27
    %v1635 = vmul.f32 %v1634, %v1548
    %1637 = vrot.lane.b32.xlu0 %v1634, 32
    %v1638 = vpop.permute.xlu0 %1637
    %v1640 = vmul.f32 %v1634, %v1638
    %1642 = vrot.lane.b32.xlu0 %v1640, 32
    %v1643 = vpop.permute.xlu0 %1642
    %v1645 = vadd.f32 %v1635, %v1643
    %v1646 = vtanh.pop %v1645
    %1648 = vrot.lane.b32.xlu0 %v1646, 32
    %v1649 = vpop.permute.xlu0 %1648
    %v1651 = vmul.f32 %v1634, %v1649
    %1653 = vrot.lane.b32.xlu0 %v1651, 64
    %v1654 = vpop.permute.xlu0 %1653
    %v1655 = vsel %vm177, %v1654, 0
    %1657 = vmatprep.subr.mxu0 0.0
    %1658 = vmatpush1.msra.mxu0 %v956
    %1659 = vmatprep.subr.mxu0 0.0
    %1660 = vmatpush1.msra.mxu0 %v957
    %1661 = vmatprep.subr.mxu0 0.0
    %1662 = vmatpush1.msra.mxu0 %v958
    %1663 = vmatprep.subr.mxu0 0.0
    %1664 = vmatpush1.msra.mxu0 %v959
    %1665 = vmatprep.subr.mxu0 0.0
    %1666 = vmatpush1.msra.mxu0 0.0
    %1667 = vmatprep.subr.mxu0 0.0
    %1668 = vmatpush1.msra.mxu0 0.0
    %1669 = vmatprep.subr.mxu0 0.0
    %1670 = vmatpush1.msra.mxu0 0.0
    %1671 = vmatprep.subr.mxu0 0.0
    %1672 = vmatpush1.msra.mxu0 0.0
    %1673 = vmatprep.subr.mxu0 0.0
    %1674 = vmatpush1.msra.mxu0 0.0
    %1675 = vmatprep.subr.mxu0 0.0
    %1676 = vmatpush1.msra.mxu0 0.0
    %1677 = vmatprep.subr.mxu0 0.0
    %1678 = vmatpush1.msra.mxu0 0.0
    %1679 = vmatprep.subr.mxu0 0.0
    %1680 = vmatpush1.msra.mxu0 0.0
    %1681 = vmatprep.subr.mxu0 0.0
    %1682 = vmatpush1.msra.mxu0 0.0
    %1683 = vmatprep.subr.mxu0 0.0
    %1684 = vmatpush1.msra.mxu0 0.0
    %1685 = vmatprep.subr.mxu0 0.0
    %1686 = vmatpush1.msra.mxu0 0.0
    %1687 = vmatprep.subr.mxu0 0.0
    %1688 = vmatpush1.msra.mxu0 0.0
    %1689 = vmatprep.subr.mxu0 0.0
    %1690 = vmatpush1.msra.mxu0 0.0
    %1691 = vmatprep.subr.mxu0 0.0
    %1692 = vmatpush1.msra.mxu0 0.0
    %1693 = vmatprep.subr.mxu0 0.0
    %1694 = vmatpush1.msra.mxu0 0.0
    %1695 = vmatprep.subr.mxu0 0.0
    %1696 = vmatpush1.msra.mxu0 0.0
    %1697 = vmatprep.subr.mxu0 0.0
    %1698 = vmatpush1.msra.mxu0 0.0
    %1699 = vmatprep.subr.mxu0 0.0
    %1700 = vmatpush1.msra.mxu0 0.0
    %1701 = vmatprep.subr.mxu0 0.0
    %1702 = vmatpush1.msra.mxu0 0.0
    %1703 = vmatprep.subr.mxu0 0.0
    %1704 = vmatpush1.msra.mxu0 0.0
    %1705 = vmatprep.subr.mxu0 0.0
    %1706 = vmatpush1.msra.mxu0 0.0
    %1707 = vmatprep.subr.mxu0 0.0
    %1708 = vmatpush1.msra.mxu0 0.0
    %1709 = vmatprep.subr.mxu0 0.0
    %1710 = vmatpush1.msra.mxu0 0.0
    %1711 = vmatprep.subr.mxu0 0.0
    %1712 = vmatpush1.msra.mxu0 0.0
    %1713 = vmatprep.subr.mxu0 0.0
    %1714 = vmatpush1.msra.mxu0 0.0
    %1715 = vmatprep.subr.mxu0 0.0
    %1716 = vmatpush1.msra.mxu0 0.0
    %1717 = vmatprep.subr.mxu0 0.0
    %1718 = vmatpush1.msra.mxu0 0.0
    %1719 = vmatprep.subr.mxu0 0.0
    %1720 = vmatpush1.msra.mxu0 0.0
    %1721 = vmatprep.mubr.f32.mxu0 0.0
    %1722 = vmatmul.mubr.f32.gmra.mrb[0].mxu0 %v1655
    %v1723 = vpop.f32.mrb[0].mxu0
    %v1724 = vadd.f32 0.0, %v1723
    %v1725 = vpop.f32.mrb[0].mxu0
    %1726 = vdwg.mxu0
    %v1727 = vadd.f32 %v1067, %v1724
    %v1728 = vmul.f32 %v1727, %v26
    %v1729 = vtanh.pop %v1728
    %v1730 = vmul.f32 %v1729, %v26
    %v1731 = vadd.f32 %v1730, %v27
    %v1732 = vmul.f32 %v1731, %v1645
    %1734 = vrot.lane.b32.xlu0 %v1731, 32
    %v1735 = vpop.permute.xlu0 %1734
    %v1737 = vmul.f32 %v1731, %v1735
    %1739 = vrot.lane.b32.xlu0 %v1737, 32
    %v1740 = vpop.permute.xlu0 %1739
    %v1742 = vadd.f32 %v1732, %v1740
    %v1743 = vtanh.pop %v1742
    %1745 = vrot.lane.b32.xlu0 %v1743, 32
    %v1746 = vpop.permute.xlu0 %1745
    %v1748 = vmul.f32 %v1731, %v1746
    %1750 = vrot.lane.b32.xlu0 %v1748, 64
    %v1751 = vpop.permute.xlu0 %1750
    %v1752 = vsel %vm177, %v1751, 0
    %1754 = vmatprep.subr.mxu0 0.0
    %1755 = vmatpush1.msra.mxu0 %v956
    %1756 = vmatprep.subr.mxu0 0.0
    %1757 = vmatpush1.msra.mxu0 %v957
    %1758 = vmatprep.subr.mxu0 0.0
    %1759 = vmatpush1.msra.mxu0 %v958
    %1760 = vmatprep.subr.mxu0 0.0
    %1761 = vmatpush1.msra.mxu0 %v959
    %1762 = vmatprep.subr.mxu0 0.0
    %1763 = vmatpush1.msra.mxu0 0.0
    %1764 = vmatprep.subr.mxu0 0.0
    %1765 = vmatpush1.msra.mxu0 0.0
    %1766 = vmatprep.subr.mxu0 0.0
    %1767 = vmatpush1.msra.mxu0 0.0
    %1768 = vmatprep.subr.mxu0 0.0
    %1769 = vmatpush1.msra.mxu0 0.0
    %1770 = vmatprep.subr.mxu0 0.0
    %1771 = vmatpush1.msra.mxu0 0.0
    %1772 = vmatprep.subr.mxu0 0.0
    %1773 = vmatpush1.msra.mxu0 0.0
    %1774 = vmatprep.subr.mxu0 0.0
    %1775 = vmatpush1.msra.mxu0 0.0
    %1776 = vmatprep.subr.mxu0 0.0
    %1777 = vmatpush1.msra.mxu0 0.0
    %1778 = vmatprep.subr.mxu0 0.0
    %1779 = vmatpush1.msra.mxu0 0.0
    %1780 = vmatprep.subr.mxu0 0.0
    %1781 = vmatpush1.msra.mxu0 0.0
    %1782 = vmatprep.subr.mxu0 0.0
    %1783 = vmatpush1.msra.mxu0 0.0
    %1784 = vmatprep.subr.mxu0 0.0
    %1785 = vmatpush1.msra.mxu0 0.0
    %1786 = vmatprep.subr.mxu0 0.0
    %1787 = vmatpush1.msra.mxu0 0.0
    %1788 = vmatprep.subr.mxu0 0.0
    %1789 = vmatpush1.msra.mxu0 0.0
    %1790 = vmatprep.subr.mxu0 0.0
    %1791 = vmatpush1.msra.mxu0 0.0
    %1792 = vmatprep.subr.mxu0 0.0
    %1793 = vmatpush1.msra.mxu0 0.0
    %1794 = vmatprep.subr.mxu0 0.0
    %1795 = vmatpush1.msra.mxu0 0.0
    %1796 = vmatprep.subr.mxu0 0.0
    %1797 = vmatpush1.msra.mxu0 0.0
    %1798 = vmatprep.subr.mxu0 0.0
    %1799 = vmatpush1.msra.mxu0 0.0
    %1800 = vmatprep.subr.mxu0 0.0
    %1801 = vmatpush1.msra.mxu0 0.0
    %1802 = vmatprep.subr.mxu0 0.0
    %1803 = vmatpush1.msra.mxu0 0.0
    %1804 = vmatprep.subr.mxu0 0.0
    %1805 = vmatpush1.msra.mxu0 0.0
    %1806 = vmatprep.subr.mxu0 0.0
    %1807 = vmatpush1.msra.mxu0 0.0
    %1808 = vmatprep.subr.mxu0 0.0
    %1809 = vmatpush1.msra.mxu0 0.0
    %1810 = vmatprep.subr.mxu0 0.0
    %1811 = vmatpush1.msra.mxu0 0.0
    %1812 = vmatprep.subr.mxu0 0.0
    %1813 = vmatpush1.msra.mxu0 0.0
    %1814 = vmatprep.subr.mxu0 0.0
    %1815 = vmatpush1.msra.mxu0 0.0
    %1816 = vmatprep.subr.mxu0 0.0
    %1817 = vmatpush1.msra.mxu0 0.0
    %1818 = vmatprep.mubr.f32.mxu0 0.0
    %1819 = vmatmul.mubr.f32.gmra.mrb[0].mxu0 %v1752
    %v1820 = vpop.f32.mrb[0].mxu0
    %v1821 = vadd.f32 0.0, %v1820
    %v1822 = vpop.f32.mrb[0].mxu0
    %1823 = vdwg.mxu0
    %v1824 = vadd.f32 %v1072, %v1821
    %v1825 = vmul.f32 %v1824, %v26
    %v1826 = vtanh.pop %v1825
    %v1827 = vmul.f32 %v1826, %v26
    %v1828 = vadd.f32 %v1827, %v27
    %v1829 = vmul.f32 %v1828, %v1742
    %1831 = vrot.lane.b32.xlu0 %v1828, 32
    %v1832 = vpop.permute.xlu0 %1831
    %v1834 = vmul.f32 %v1828, %v1832
    %1836 = vrot.lane.b32.xlu0 %v1834, 32
    %v1837 = vpop.permute.xlu0 %1836
    %v1839 = vadd.f32 %v1829, %v1837
    %v1840 = vtanh.pop %v1839
    %1842 = vrot.lane.b32.xlu0 %v1840, 32
    %v1843 = vpop.permute.xlu0 %1842
    %v1845 = vmul.f32 %v1828, %v1843
    %v1846 = vld [vmem:[#allocation2 + $0x80] sm:$0xff]
    %v1847 = vld [vmem:[#allocation2 + $0x90] sm:$0xff]
    %v1848 = vld [vmem:[#allocation2 + $0x98] sm:$0xff]
    %v1849 = vld [vmem:[#allocation2 + $0xa0] sm:$0xff]
    %v1850 = vld [vmem:[#allocation2 + $0xa8] sm:$0xff]
    %v1851 = vld [vmem:[#allocation2 + $0xb0] sm:$0x1]
    %1853 = vrot.lane.b32.xlu0 %v1845, 64
    %v1854 = vpop.permute.xlu0 %1853
    %1856 = vxpose.xlu0.b32.start [1/16] %v1854, 128
    %1857 = vxpose.xlu0.b32.cont [2/16] 0.0, 128
    %1858 = vxpose.xlu0.b32.cont [3/16] 0.0, 128
    %1859 = vxpose.xlu0.b32.cont [4/16] 0.0, 128
    %1860 = vxpose.xlu0.b32.cont [5/16] 0.0, 128
    %1861 = vxpose.xlu0.b32.cont [6/16] 0.0, 128
    %1862 = vxpose.xlu0.b32.cont [7/16] 0.0, 128
    %1863 = vxpose.xlu0.b32.cont [8/16] 0.0, 128
    %1864 = vxpose.xlu0.b32.cont [9/16] 0.0, 128
    %1865 = vxpose.xlu0.b32.cont [10/16] 0.0, 128
    %1866 = vxpose.xlu0.b32.cont [11/16] 0.0, 128
    %1867 = vxpose.xlu0.b32.cont [12/16] 0.0, 128
    %1868 = vxpose.xlu0.b32.cont [13/16] 0.0, 128
    %1869 = vxpose.xlu0.b32.cont [14/16] 0.0, 128
    %1870 = vxpose.xlu0.b32.cont [15/16] 0.0, 128
    %1871 = vxpose.xlu0.b32.end [16/16] 0.0, 128
    %v1872 = vpop.trf.xlu0
    %v1873 = vpop.trf.xlu0
    %v1874 = vpop.trf.xlu0
    %v1875 = vpop.trf.xlu0
    %v1876 = vpop.trf.xlu0
    %v1877 = vpop.trf.xlu0
    %v1878 = vpop.trf.xlu0
    %v1879 = vpop.trf.xlu0
    %v1880 = vpop.trf.xlu0
    %v1881 = vpop.trf.xlu0
    %v1882 = vpop.trf.xlu0
    %v1883 = vpop.trf.xlu0
    %v1884 = vpop.trf.xlu0
    %v1885 = vpop.trf.xlu0
    %v1886 = vpop.trf.xlu0
    %v1887 = vpop.trf.xlu0
    %vm1888 = vcmask 64512
    %v1890 = vsel %vm1888, %v1872, 0
    %v1893 = vsel %vm1888, %v1873, 0
    %v1896 = vsel %vm1888, %v1874, 0
    %v1899 = vsel %vm1888, %v1875, 0
    %1901 = vmatprep.subr.mxu0 0.0
    %1902 = vmatpush1.msra.mxu0 %v1846
    %1903 = vmatprep.subr.mxu0 0.0
    %1904 = vmatpush1.msra.mxu0 0.0
    %1905 = vmatprep.subr.mxu0 0.0
    %1906 = vmatpush1.msra.mxu0 0.0
    %1907 = vmatprep.subr.mxu0 0.0
    %1908 = vmatpush1.msra.mxu0 0.0
    %1909 = vmatprep.subr.mxu0 0.0
    %1910 = vmatpush1.msra.mxu0 0.0
    %1911 = vmatprep.subr.mxu0 0.0
    %1912 = vmatpush1.msra.mxu0 0.0
    %1913 = vmatprep.subr.mxu0 0.0
    %1914 = vmatpush1.msra.mxu0 0.0
    %1915 = vmatprep.subr.mxu0 0.0
    %1916 = vmatpush1.msra.mxu0 0.0
    %1917 = vmatprep.subr.mxu0 0.0
    %1918 = vmatpush1.msra.mxu0 0.0
    %1919 = vmatprep.subr.mxu0 0.0
    %1920 = vmatpush1.msra.mxu0 0.0
    %1921 = vmatprep.subr.mxu0 0.0
    %1922 = vmatpush1.msra.mxu0 0.0
    %1923 = vmatprep.subr.mxu0 0.0
    %1924 = vmatpush1.msra.mxu0 0.0
    %1925 = vmatprep.subr.mxu0 0.0
    %1926 = vmatpush1.msra.mxu0 0.0
    %1927 = vmatprep.subr.mxu0 0.0
    %1928 = vmatpush1.msra.mxu0 0.0
    %1929 = vmatprep.subr.mxu0 0.0
    %1930 = vmatpush1.msra.mxu0 0.0
    %1931 = vmatprep.subr.mxu0 0.0
    %1932 = vmatpush1.msra.mxu0 0.0
    %1933 = vmatprep.subr.mxu0 0.0
    %1934 = vmatpush1.msra.mxu0 0.0
    %1935 = vmatprep.subr.mxu0 0.0
    %1936 = vmatpush1.msra.mxu0 0.0
    %1937 = vmatprep.subr.mxu0 0.0
    %1938 = vmatpush1.msra.mxu0 0.0
    %1939 = vmatprep.subr.mxu0 0.0
    %1940 = vmatpush1.msra.mxu0 0.0
    %1941 = vmatprep.subr.mxu0 0.0
    %1942 = vmatpush1.msra.mxu0 0.0
    %1943 = vmatprep.subr.mxu0 0.0
    %1944 = vmatpush1.msra.mxu0 0.0
    %1945 = vmatprep.subr.mxu0 0.0
    %1946 = vmatpush1.msra.mxu0 0.0
    %1947 = vmatprep.subr.mxu0 0.0
    %1948 = vmatpush1.msra.mxu0 0.0
    %1949 = vmatprep.subr.mxu0 0.0
    %1950 = vmatpush1.msra.mxu0 0.0
    %1951 = vmatprep.subr.mxu0 0.0
    %1952 = vmatpush1.msra.mxu0 0.0
    %1953 = vmatprep.subr.mxu0 0.0
    %1954 = vmatpush1.msra.mxu0 0.0
    %1955 = vmatprep.subr.mxu0 0.0
    %1956 = vmatpush1.msra.mxu0 0.0
    %1957 = vmatprep.subr.mxu0 0.0
    %1958 = vmatpush1.msra.mxu0 0.0
    %1959 = vmatprep.subr.mxu0 0.0
    %1960 = vmatpush1.msra.mxu0 0.0
    %1961 = vmatprep.subr.mxu0 0.0
    %1962 = vmatpush1.msra.mxu0 0.0
    %1963 = vmatprep.subr.mxu0 0.0
    %1964 = vmatpush1.msra.mxu0 0.0
    %1965 = vmatprep.mubr.f32.mxu0 0.0
    %1966 = vmatmul.mubr.f32.gmra.mrb[0].mxu0 %v1890
    %v1967 = vpop.f32.mrb[0].mxu0
    %v1968 = vadd.f32 %v964, %v1967
    %v1969 = vpop.f32.mrb[0].mxu0
    %1970 = vmatprep.mubr.f32.mxu0 0.0
    %1971 = vmatmul.mubr.f32.gmra.mrb[0].mxu0 %v1893
    %v1972 = vpop.f32.mrb[0].mxu0
    %v1973 = vadd.f32 %v964, %v1972
    %v1974 = vpop.f32.mrb[0].mxu0
    %1975 = vmatprep.mubr.f32.mxu0 0.0
    %1976 = vmatmul.mubr.f32.gmra.mrb[0].mxu0 %v1896
    %v1977 = vpop.f32.mrb[0].mxu0
    %v1978 = vadd.f32 %v964, %v1977
    %v1979 = vpop.f32.mrb[0].mxu0
    %1980 = vmatprep.mubr.f32.mxu0 0.0
    %1981 = vmatmul.mubr.f32.gmra.mrb[0].mxu0 %v1899
    %v1982 = vpop.f32.mrb[0].mxu0
    %v1983 = vadd.f32 %v964, %v1982
    %v1984 = vpop.f32.mrb[0].mxu0
    %1985 = vdwg.mxu0
    %v1986 = vtanh.pop %v1968
    %v1987 = vtanh.pop %v1973
    %v1988 = vtanh.pop %v1978
    %v1989 = vtanh.pop %v1983
    %v1990 = vlaneseq
    %v1991 = vshrl.u32 %v1990, 7
    %v1992 = vsub.s32 0, %v1991
    %v1993 = vrot.slane %v1851, %v1992
    %v1995 = vsel %vm177, %v1986, 0
    %v1998 = vsel %vm177, %v1987, 0
    %v2001 = vsel %vm177, %v1988, 0
    %v2004 = vsel %vm177, %v1989, 0
    %2006 = vmatprep.subr.mxu0 0.0
    %2007 = vmatpush1.msra.mxu0 %v1847
    %2008 = vmatprep.subr.mxu0 0.0
    %2009 = vmatpush1.msra.mxu0 %v1848
    %2010 = vmatprep.subr.mxu0 0.0
    %2011 = vmatpush1.msra.mxu0 %v1849
    %2012 = vmatprep.subr.mxu0 0.0
    %2013 = vmatpush1.msra.mxu0 %v1850
    %2014 = vmatprep.subr.mxu0 0.0
    %2015 = vmatpush1.msra.mxu0 0.0
    %2016 = vmatprep.subr.mxu0 0.0
    %2017 = vmatpush1.msra.mxu0 0.0
    %2018 = vmatprep.subr.mxu0 0.0
    %2019 = vmatpush1.msra.mxu0 0.0
    %2020 = vmatprep.subr.mxu0 0.0
    %2021 = vmatpush1.msra.mxu0 0.0
    %2022 = vmatprep.subr.mxu0 0.0
    %2023 = vmatpush1.msra.mxu0 0.0
    %2024 = vmatprep.subr.mxu0 0.0
    %2025 = vmatpush1.msra.mxu0 0.0
    %2026 = vmatprep.subr.mxu0 0.0
    %2027 = vmatpush1.msra.mxu0 0.0
    %2028 = vmatprep.subr.mxu0 0.0
    %2029 = vmatpush1.msra.mxu0 0.0
    %2030 = vmatprep.subr.mxu0 0.0
    %2031 = vmatpush1.msra.mxu0 0.0
    %2032 = vmatprep.subr.mxu0 0.0
    %2033 = vmatpush1.msra.mxu0 0.0
    %2034 = vmatprep.subr.mxu0 0.0
    %2035 = vmatpush1.msra.mxu0 0.0
    %2036 = vmatprep.subr.mxu0 0.0
    %2037 = vmatpush1.msra.mxu0 0.0
    %2038 = vmatprep.subr.mxu0 0.0
    %2039 = vmatpush1.msra.mxu0 0.0
    %2040 = vmatprep.subr.mxu0 0.0
    %2041 = vmatpush1.msra.mxu0 0.0
    %2042 = vmatprep.subr.mxu0 0.0
    %2043 = vmatpush1.msra.mxu0 0.0
    %2044 = vmatprep.subr.mxu0 0.0
    %2045 = vmatpush1.msra.mxu0 0.0
    %2046 = vmatprep.subr.mxu0 0.0
    %2047 = vmatpush1.msra.mxu0 0.0
    %2048 = vmatprep.subr.mxu0 0.0
    %2049 = vmatpush1.msra.mxu0 0.0
    %2050 = vmatprep.subr.mxu0 0.0
    %2051 = vmatpush1.msra.mxu0 0.0
    %2052 = vmatprep.subr.mxu0 0.0
    %2053 = vmatpush1.msra.mxu0 0.0
    %2054 = vmatprep.subr.mxu0 0.0
    %2055 = vmatpush1.msra.mxu0 0.0
    %2056 = vmatprep.subr.mxu0 0.0
    %2057 = vmatpush1.msra.mxu0 0.0
    %2058 = vmatprep.subr.mxu0 0.0
    %2059 = vmatpush1.msra.mxu0 0.0
    %2060 = vmatprep.subr.mxu0 0.0
    %2061 = vmatpush1.msra.mxu0 0.0
    %2062 = vmatprep.subr.mxu0 0.0
    %2063 = vmatpush1.msra.mxu0 0.0
    %2064 = vmatprep.subr.mxu0 0.0
    %2065 = vmatpush1.msra.mxu0 0.0
    %2066 = vmatprep.subr.mxu0 0.0
    %2067 = vmatpush1.msra.mxu0 0.0
    %2068 = vmatprep.subr.mxu0 0.0
    %2069 = vmatpush1.msra.mxu0 0.0
    %2070 = vmatprep.mubr.f32.mxu0 0.0
    %2071 = vmatmul.mubr.f32.gmra.mrb[0].mxu0 %v1995
    %v2072 = vpop.f32.mrb[0].mxu0
    %v2073 = vadd.f32 %v1993, %v2072
    %v2074 = vpop.f32.mrb[0].mxu0
    %2075 = vmatprep.mubr.f32.mxu0 0.0
    %2076 = vmatmul.mubr.f32.gmra.mrb[0].mxu0 %v1998
    %v2077 = vpop.f32.mrb[0].mxu0
    %v2078 = vadd.f32 %v1993, %v2077
    %v2079 = vpop.f32.mrb[0].mxu0
    %2080 = vmatprep.mubr.f32.mxu0 0.0
    %2081 = vmatmul.mubr.f32.gmra.mrb[0].mxu0 %v2001
    %v2082 = vpop.f32.mrb[0].mxu0
    %v2083 = vadd.f32 %v1993, %v2082
    %v2084 = vpop.f32.mrb[0].mxu0
    %2085 = vmatprep.mubr.f32.mxu0 0.0
    %2086 = vmatmul.mubr.f32.gmra.mrb[0].mxu0 %v2004
    %v2087 = vpop.f32.mrb[0].mxu0
    %v2088 = vadd.f32 %v1993, %v2087
    %v2089 = vpop.f32.mrb[0].mxu0
    %2090 = vdwg.mxu0
    %vm2091 = vcmask 39936
    %v2092 = vsel %vm2091, %v2073, -inf
    %2093 = vmax.xlane.f32.xlu0 %v2092
    %v2094 = vpop.xlane.xlu0 %2093
    %v2095 = vsel %vm2091, %v2078, -inf
    %2096 = vmax.xlane.f32.xlu0 %v2095
    %v2097 = vpop.xlane.xlu0 %2096
    %v2098 = vsel %vm2091, %v2083, -inf
    %2099 = vmax.xlane.f32.xlu0 %v2098
    %v2100 = vpop.xlane.xlu0 %2099
    %v2101 = vsel %vm2091, %v2088, -inf
    %2102 = vmax.xlane.f32.xlu0 %v2101
    %v2103 = vpop.xlane.xlu0 %2102
    %v2104 = vsub.f32 %v2073, %v2094
    %v2105 = vsub.f32 %v2078, %v2097
    %v2106 = vsub.f32 %v2083, %v2100
    %v2107 = vsub.f32 %v2088, %v2103
    %v2108 = vmul.f32 %v2104, 1.442695
    %v2109 = vpow.pop %v2108
    %v2110 = vmul.f32 %v2105, 1.442695
    %v2111 = vpow.pop %v2110
    %v2112 = vmul.f32 %v2106, 1.442695
    %v2113 = vpow.pop %v2112
    %v2114 = vmul.f32 %v2107, 1.442695
    %v2115 = vpow.pop %v2114
    %v2116 = vsel %vm2091, %v2109, 0.0
    %2117 = vadd.xlane.f32.xlu0 %v2116
    %v2118 = vpop.xlane.xlu0 %2117
    %v2119 = vsel %vm2091, %v2111, 0.0
    %2120 = vadd.xlane.f32.xlu0 %v2119
    %v2121 = vpop.xlane.xlu0 %2120
    %v2122 = vsel %vm2091, %v2113, 0.0
    %2123 = vadd.xlane.f32.xlu0 %v2122
    %v2124 = vpop.xlane.xlu0 %2123
    %v2125 = vsel %vm2091, %v2115, 0.0
    %2126 = vadd.xlane.f32.xlu0 %v2125
    %v2127 = vpop.xlane.xlu0 %2126
    %v2128 = vrcp.pop %v2118
    %v2129 = vmul.f32 %v2109, %v2128
    %v2130 = vrcp.pop %v2121
    %v2131 = vmul.f32 %v2111, %v2130
    %v2132 = vrcp.pop %v2124
    %v2133 = vmul.f32 %v2113, %v2132
    %v2134 = vrcp.pop %v2127
    %v2135 = vmul.f32 %v2115, %v2134
    %2136 = vst.msk [vmem:[%s2] sm:$0xff] %vm2091, %v2129
    %2137 = vst.msk [vmem:[%s2 + $0x8] sm:$0xff] %vm2091, %v2131
    %2138 = vst.msk [vmem:[%s2 + $0x10] sm:$0xff] %vm2091, %v2133
    %2139 = vst.msk [vmem:[%s2 + $0x18] sm:$0xff] %vm2091, %v2135
    // Predicated region
    $region14: #{_lambda_.1} parent=1 // pred_check
      _
    $region15: #{_lambda_.1} parent=1 // pred_check_branch
      %2141 = sbr.rel (0) target = $region17
    $region16: #{_lambda_.1} parent=1 // pred_region
      _
    $region17: #{_lambda_.1} parent=1 // pred_fallthru
      _
    // Predicated region
    $region18: #{_lambda_.1} parent=1 // pred_check
      _
    $region19: #{_lambda_.1} parent=1 // pred_check_branch
      %2143 = sbr.rel (0) target = $region21
    $region20: #{_lambda_.1} parent=1 // pred_region
      _
    $region21: #{_lambda_.1} parent=1 // pred_fallthru
      _
    %2144 = vsyncpa [#allocation3], 1

</llo_original>
